<compile_context>
chip_gen: v5e
topology: v5e:2x2
jax: 0.10.0
libtpu: 0.0.40
codegen_flags: <defaults>
</compile_context>

<pallas_src>
import functools

import jax
import jax.numpy as jnp
from jax.experimental import pallas as pl
from jax.experimental.pallas import tpu as pltpu


def _round_up(x, m):
    return (x + m - 1) // m * m


def _pad2(a, rows, cols):
    a = jnp.asarray(a)
    pr, pc = rows - a.shape[0], cols - a.shape[1]
    if pr or pc:
        a = jnp.pad(a, ((0, pr), (0, pc)))
    return a


def sae_kernel(x_ref, lnw_ref, lnb_ref,
               w1_ref, b1_ref, w2_ref, b2_ref,
               w3_ref, b3_ref, w4_ref, b4_ref,
               dec_ref, l1_ref, *, d_true, b_true, b_padded, block_b, eps):
    cdt = w1_ref.dtype  # MXU compute dtype (bf16 by default, f32 for checking)

    # ---- LayerNorm over the true (unpadded) feature dim, in f32 ----
    x = x_ref[...].astype(jnp.float32)
    tb, dp = x.shape
    mean = jnp.sum(x, axis=-1, keepdims=True) * (1.0 / d_true)  # padded cols are 0
    xc = x - mean
    if d_true != dp:  # static: mask only when feature padding exists
        col_valid = jax.lax.broadcasted_iota(jnp.int32, (1, dp), 1) < d_true
        xc = jnp.where(col_valid, xc, 0.0)
    var = jnp.sum(xc * xc, axis=-1, keepdims=True) * (1.0 / d_true)
    # Padded ln_w / ln_b columns are zero, so padded xn columns stay exactly 0.
    xn = xc * jax.lax.rsqrt(var + eps) * lnw_ref[...] + lnb_ref[...]

    # ---- encoder: Linear(D,6D) -> LeakyReLU(0.1) -> Linear(6D,12D) ----
    h1 = jnp.dot(xn.astype(cdt), w1_ref[...],
                 preferred_element_type=jnp.float32) + b1_ref[...]
    h1 = jnp.maximum(h1, 0.1 * h1)  # LeakyReLU(0.1), two VPU ops
    enc = jnp.dot(h1.astype(cdt), w2_ref[...],
                  preferred_element_type=jnp.float32) + b2_ref[...]

    # ---- decoder: Linear(12D,6D) -> LeakyReLU(0.1) -> Linear(6D,D) ----
    h2 = jnp.dot(enc.astype(cdt), w3_ref[...],
                 preferred_element_type=jnp.float32) + b3_ref[...]
    h2 = jnp.maximum(h2, 0.1 * h2)
    dec = jnp.dot(h2.astype(cdt), w4_ref[...],
                  preferred_element_type=jnp.float32) + b4_ref[...]
    dec_ref[...] = dec.astype(dec_ref.dtype)

    # ---- L1 partial: lane-dense per-block column sums of |enc| (f32) ----
    # Padded feature columns of enc are exactly 0 (zero weight cols + zero
    # bias); padded batch rows (last block only) are masked via a (TB,1) iota
    # so the wrapper's final jnp.sum over all partials equals sum(|enc|) of the
    # true batch.
    abs_enc = jnp.abs(enc)
    if b_true != b_padded:  # static: mask only when batch padding exists
        row_ids = (jax.lax.broadcasted_iota(jnp.int32, (tb, 1), 0)
                   + pl.program_id(0) * block_b)
        abs_enc = jnp.where(row_ids < b_true, abs_enc, 0.0)
    h2p = abs_enc.shape[-1]
    l1_ref[...] = jnp.sum(abs_enc, axis=0, keepdims=True).reshape(1, 1, h2p)


def robust_sparse_autoencoder_forward(x, params, *, block_b=None,
                                      compute_dtype=jnp.bfloat16, eps=1e-5,
                                      single_buffer_weights=True):
    B, D = x.shape
    H1, H2 = 6 * D, 12 * D
    Dp, H1p, H2p = _round_up(D, 128), _round_up(H1, 128), _round_up(H2, 128)

    # --- generation-aware sizing (trace-time host queries) -------------------
    kind = ""
    try:
        kind = jax.devices()[0].device_kind.lower()
    except Exception:
        pass
    if block_b is None:
        # 256-row tiles feed the 256-wide MXU on v6e/v7x; v5e (128x128 MXU,
        # single vst slot, tighter vreg budget) prefers 128.
        block_b = 128 if ("v5e" in kind or "v5 lite" in kind or "v5lite" in kind) else 256

    try:
        vmem_cap = int(pltpu.get_tpu_info().vmem_capacity_bytes)
    except Exception:
        vmem_cap = 64 * 1024 * 1024  # conservative (v7x per-TC capacity)

    # Batch tile: >=8 sublanes, capped at block_b.
    TB = min(block_b, _round_up(B, 8))
    Bp = _round_up(B, TB)
    G = Bp // TB
    # Guarantee >=2 grid steps when possible so dimension_semantics=("parallel",)
    # can shard the grid across both TensorCores on dual-core chips (v7x).
    if G == 1 and TB > 8:
        TB = _round_up(-(-TB // 2), 8)
        Bp = _round_up(B, TB)
        G = Bp // TB

    wbytes = jnp.dtype(compute_dtype).itemsize
    weight_bytes = (Dp * H1p + H1p * H2p + H2p * H1p + H1p * Dp) * wbytes
    bias_bytes = (3 * Dp + 2 * H1p + H2p) * 4
    wb_bufs = 1 if single_buffer_weights else 2

    def est_vmem(tb):
        io = 2 * 2 * (tb * Dp * 4) + 2 * H2p * 4        # x/dec tiles (2-buffered) + L1 part
        act = tb * (2 * H1p + H2p + Dp) * (4 + wbytes)  # f32 intermediates + cdt casts
        return wb_bufs * (weight_bytes + bias_bytes) + io + act

    # Shrink the batch tile until the truthful footprint fits the chip budget.
    while est_vmem(TB) > vmem_cap - (6 << 20) and TB > 8:
        TB = max(8, _round_up(TB // 2, 8))
        Bp = _round_up(B, TB)
        G = Bp // TB

    vmem_limit = int(min(vmem_cap - (2 << 20),
                         max(32 << 20, est_vmem(TB) + (6 << 20))))

    f32 = jnp.float32
    xp = _pad2(x.astype(f32), Bp, Dp)
    lnw = _pad2(jnp.asarray(params["ln_w"], f32).reshape(1, D), 1, Dp)
    lnb = _pad2(jnp.asarray(params["ln_b"], f32).reshape(1, D), 1, Dp)
    w1 = _pad2(jnp.asarray(params["w1"], f32), Dp, H1p).astype(compute_dtype)
    w2 = _pad2(jnp.asarray(params["w2"], f32), H1p, H2p).astype(compute_dtype)
    w3 = _pad2(jnp.asarray(params["w3"], f32), H2p, H1p).astype(compute_dtype)
    w4 = _pad2(jnp.asarray(params["w4"], f32), H1p, Dp).astype(compute_dtype)
    b1 = _pad2(jnp.asarray(params["b1"], f32).reshape(1, H1), 1, H1p)
    b2 = _pad2(jnp.asarray(params["b2"], f32).reshape(1, H2), 1, H2p)
    b3 = _pad2(jnp.asarray(params["b3"], f32).reshape(1, H1), 1, H1p)
    b4 = _pad2(jnp.asarray(params["b4"], f32).reshape(1, D), 1, Dp)

    def const_spec(shape):
        # Weight/bias blocks never change across grid steps: single-buffer them
        # so the pipeliner does not allocate a second (dead) copy in VMEM.
        idx = lambda i: (0,) * len(shape)
        if single_buffer_weights:
            try:
                return pl.BlockSpec(shape, idx, pipeline_mode=pl.Buffered(1))
            except Exception:
                pass
        return pl.BlockSpec(shape, idx)

    in_specs = [
        pl.BlockSpec((TB, Dp), lambda i: (i, 0)),          # x tile (double-buffered)
        const_spec((1, Dp)), const_spec((1, Dp)),          # ln_w, ln_b
        const_spec((Dp, H1p)), const_spec((1, H1p)),       # w1, b1
        const_spec((H1p, H2p)), const_spec((1, H2p)),      # w2, b2
        const_spec((H2p, H1p)), const_spec((1, H1p)),      # w3, b3
        const_spec((H1p, Dp)), const_spec((1, Dp)),        # w4, b4
    ]
    out_specs = (
        pl.BlockSpec((TB, Dp), lambda i: (i, 0)),          # decoded tile
        pl.BlockSpec((1, 1, H2p), lambda i: (i, 0, 0)),    # per-block L1 partials
    )

    cost = pl.CostEstimate(
        flops=2 * Bp * (Dp * H1p + H1p * H2p + H2p * H1p + H1p * Dp),
        transcendentals=Bp,
        bytes_accessed=(Bp * Dp * 4) * 2 + weight_bytes + bias_bytes + G * H2p * 4,
    )

    kernel = functools.partial(sae_kernel, d_true=D, b_true=B, b_padded=Bp,
                               block_b=TB, eps=eps)
    dec_p, l1_parts = pl.pallas_call(
        kernel,
        grid_spec=pltpu.PrefetchScalarGridSpec(
            num_scalar_prefetch=0,
            grid=(G,),
            in_specs=in_specs,
            out_specs=out_specs,
        ),
        out_shape=(
            jax.ShapeDtypeStruct((Bp, Dp), jnp.float32),
            jax.ShapeDtypeStruct((G, 1, H2p), jnp.float32),
        ),
        compiler_params=pltpu.CompilerParams(
            dimension_semantics=("parallel",),
            vmem_limit_bytes=vmem_limit,
        ),
        cost_estimate=cost,
    )(xp, lnw, lnb, w1, b1, w2, b2, w3, b3, w4, b4)

    dec = dec_p[:B, :D]
    # NOTE: 0.001 / B is baked at trace time (static B), matching the module.
    l1 = jnp.sum(l1_parts) * (0.001 / B)
    return dec, l1


def init_params(key, input_dim):
    D, H1, H2 = input_dim, input_dim * 6, input_dim * 12
    ks = jax.random.split(key, 8)

    def lin(kw, kb, fan_in, fan_out):
        bound = 1.0 / jnp.sqrt(fan_in)
        w = jax.random.uniform(kw, (fan_in, fan_out), jnp.float32, -bound, bound)
        b = jax.random.uniform(kb, (1, fan_out), jnp.float32, -bound, bound)
        return w, b

    w1, b1 = lin(ks[0], ks[1], D, H1)
    w2, b2 = lin(ks[2], ks[3], H1, H2)
    w3, b3 = lin(ks[4], ks[5], H2, H1)
    w4, b4 = lin(ks[6], ks[7], H1, D)
    return {
        "ln_w": jnp.ones((1, D), jnp.float32),
        "ln_b": jnp.zeros((1, D), jnp.float32),
        "w1": w1, "b1": b1, "w2": w2, "b2": b2,
        "w3": w3, "b3": b3, "w4": w4, "b4": b4,
    }


def reference_forward(x, params, eps=1e-5):
    mean = jnp.mean(x, axis=-1, keepdims=True)
    var = jnp.mean((x - mean) ** 2, axis=-1, keepdims=True)
    xn = (x - mean) / jnp.sqrt(var + eps) * params["ln_w"] + params["ln_b"]
    h1 = xn @ params["w1"] + params["b1"]
    h1 = jnp.where(h1 > 0, h1, 0.1 * h1)
    enc = h1 @ params["w2"] + params["b2"]
    h2 = enc @ params["w3"] + params["b3"]
    h2 = jnp.where(h2 > 0, h2, 0.1 * h2)
    dec = h2 @ params["w4"] + params["b4"]
    return dec, jnp.sum(jnp.abs(enc)) * 0.001 / x.shape[0]


# Whether single-buffered weight specs (pl.Buffered(1)) are supported by this
# jax build; flipped to False on the first lowering failure and reused after.
_SINGLE_BUFFER_WEIGHTS = [True]


def _forward(x, params, **kw):
    while True:
        fwd = jax.jit(functools.partial(
            robust_sparse_autoencoder_forward,
            single_buffer_weights=_SINGLE_BUFFER_WEIGHTS[0], **kw))
        try:
            out = fwd(x, params)
            jax.block_until_ready(out)
            return out
        except Exception:
            if not _SINGLE_BUFFER_WEIGHTS[0]:
                raise
            _SINGLE_BUFFER_WEIGHTS[0] = False  # retry with default 2-buffering


if __name__ == "__main__":
    key = jax.random.PRNGKey(0)

    def check(B, D, salt):
        kx, kp = jax.random.split(jax.random.fold_in(key, salt))
        x = jax.random.normal(kx, (B, D), jnp.float32)
        params = init_params(kp, D)
        dec_ref, l1_ref = reference_forward(x, params)

        # 1) f32 MXU path: tight check of kernel logic (LayerNorm masking,
        #    feature/batch padding, per-block L1 partials, grid split).
        dec, l1 = _forward(x, params, compute_dtype=jnp.float32)
        assert jnp.allclose(dec, dec_ref, atol=1e-3, rtol=1e-3), "f32 dec mismatch"
        assert jnp.allclose(l1, l1_ref, atol=1e-3, rtol=1e-3), "f32 l1 mismatch"

        # 2) bf16 MXU path (default performance config): bf16 operands with
        #    f32 accumulation, so it tracks the f32 module to bf16 accuracy.
        dec_b, l1_b = _forward(x, params)
        assert jnp.allclose(dec_b, dec_ref, atol=5e-2, rtol=5e-2), "bf16 dec mismatch"
        assert jnp.allclose(l1_b, l1_ref, atol=2e-3, rtol=2e-2), "bf16 l1 mismatch"

    check(8, 32, 0)    # D=32 -> padded lanes 128/256/384, single 8-row tile
    check(12, 48, 1)   # batch-row padding (12 -> 2x8 tiles) + feature padding
    check(16, 128, 2)  # D % 128 == 0 path (no feature mask), 2-step grid
    print("KERNEL_OK")
</pallas_src>

<mosaic_0001>
module attributes {stable_mosaic.version = 11 : i64} {
  func.func @sae_kernel(%arg0: i32, %arg1: memref<8x128xf32, #tpu.memory_space<vmem>>, %arg2: memref<1x128xf32, #tpu.memory_space<vmem>>, %arg3: memref<1x128xf32, #tpu.memory_space<vmem>>, %arg4: memref<128x256xf32, #tpu.memory_space<vmem>>, %arg5: memref<1x256xf32, #tpu.memory_space<vmem>>, %arg6: memref<256x384xf32, #tpu.memory_space<vmem>>, %arg7: memref<1x384xf32, #tpu.memory_space<vmem>>, %arg8: memref<384x256xf32, #tpu.memory_space<vmem>>, %arg9: memref<1x256xf32, #tpu.memory_space<vmem>>, %arg10: memref<256x128xf32, #tpu.memory_space<vmem>>, %arg11: memref<1x128xf32, #tpu.memory_space<vmem>>, %arg12: memref<8x128xf32, #tpu.memory_space<vmem>>, %arg13: memref<1x1x384xf32, #tpu.memory_space<vmem>>) attributes {dimension_semantics = [#tpu.dimension_semantics<parallel>], iteration_bounds = array<i64: 1>, scalar_prefetch = 0 : i64, scratch_operands = 0 : i64, tpu.core_type = #tpu.core_type<tc>, window_params = [{transform_indices = @transform_0, window_bounds = array<i64: 8, 128>}, {pipeline_mode = #tpu.pipeline_mode<synchronous>, transform_indices = @transform_1, window_bounds = array<i64: 1, 128>}, {pipeline_mode = #tpu.pipeline_mode<synchronous>, transform_indices = @transform_2, window_bounds = array<i64: 1, 128>}, {pipeline_mode = #tpu.pipeline_mode<synchronous>, transform_indices = @transform_3, window_bounds = array<i64: 128, 256>}, {pipeline_mode = #tpu.pipeline_mode<synchronous>, transform_indices = @transform_4, window_bounds = array<i64: 1, 256>}, {pipeline_mode = #tpu.pipeline_mode<synchronous>, transform_indices = @transform_5, window_bounds = array<i64: 256, 384>}, {pipeline_mode = #tpu.pipeline_mode<synchronous>, transform_indices = @transform_6, window_bounds = array<i64: 1, 384>}, {pipeline_mode = #tpu.pipeline_mode<synchronous>, transform_indices = @transform_7, window_bounds = array<i64: 384, 256>}, {pipeline_mode = #tpu.pipeline_mode<synchronous>, transform_indices = @transform_8, window_bounds = array<i64: 1, 256>}, {pipeline_mode = #tpu.pipeline_mode<synchronous>, transform_indices = @transform_9, window_bounds = array<i64: 256, 128>}, {pipeline_mode = #tpu.pipeline_mode<synchronous>, transform_indices = @transform_10, window_bounds = array<i64: 1, 128>}, {transform_indices = @transform_11, window_bounds = array<i64: 8, 128>}, {transform_indices = @transform_12, window_bounds = array<i64: 1, 1, 384>}]} {
    %c0 = arith.constant 0 : index
    %c0_0 = arith.constant 0 : index
    %0 = vector.load %arg1[%c0, %c0_0] : memref<8x128xf32, #tpu.memory_space<vmem>>, vector<8x128xf32>
    %cst = arith.constant dense<0.000000e+00> : vector<8xf32>
    %1 = vector.multi_reduction <add>, %0, %cst [1] : vector<8x128xf32> to vector<8xf32>
    %2 = vector.shape_cast %1 : vector<8xf32> to vector<8x1xf32>
    %cst_1 = arith.constant 3.125000e-02 : f32
    %3 = vector.broadcast %cst_1 : f32 to vector<8x1xf32>
    %4 = arith.mulf %2, %3 : vector<8x1xf32>
    %5 = vector.broadcast %4 : vector<8x1xf32> to vector<8x128xf32>
    %6 = arith.subf %0, %5 : vector<8x128xf32>
    %7 = tpu.iota {dimensions = array<i32: 1>} : vector<1x128xi32>
    %c32_i32 = arith.constant 32 : i32
    %8 = vector.broadcast %c32_i32 : i32 to vector<1x128xi32>
    %9 = arith.cmpi slt, %7, %8 : vector<1x128xi32>
    %cst_2 = arith.constant 0.000000e+00 : f32
    %10 = vector.shape_cast %9 : vector<1x128xi1> to vector<1x128xi1>
    %11 = vector.broadcast %10 : vector<1x128xi1> to vector<8x128xi1>
    %12 = vector.broadcast %cst_2 : f32 to vector<8x128xf32>
    %13 = arith.select %11, %6, %12 : vector<8x128xi1>, vector<8x128xf32>
    %14 = arith.mulf %13, %13 : vector<8x128xf32>
    %cst_3 = arith.constant dense<0.000000e+00> : vector<8xf32>
    %15 = vector.multi_reduction <add>, %14, %cst_3 [1] : vector<8x128xf32> to vector<8xf32>
    %16 = vector.shape_cast %15 : vector<8xf32> to vector<8x1xf32>
    %cst_4 = arith.constant 3.125000e-02 : f32
    %17 = vector.broadcast %cst_4 : f32 to vector<8x1xf32>
    %18 = arith.mulf %16, %17 : vector<8x1xf32>
    %cst_5 = arith.constant 9.99999974E-6 : f32
    %19 = vector.broadcast %cst_5 : f32 to vector<8x1xf32>
    %20 = arith.addf %18, %19 : vector<8x1xf32>
    %21 = math.rsqrt %20 : vector<8x1xf32>
    %22 = vector.broadcast %21 : vector<8x1xf32> to vector<8x128xf32>
    %23 = arith.mulf %13, %22 : vector<8x128xf32>
    %c0_6 = arith.constant 0 : index
    %c0_7 = arith.constant 0 : index
    %24 = vector.load %arg2[%c0_6, %c0_7] : memref<1x128xf32, #tpu.memory_space<vmem>>, vector<1x128xf32>
    %25 = vector.broadcast %24 : vector<1x128xf32> to vector<8x128xf32>
    %26 = arith.mulf %23, %25 : vector<8x128xf32>
    %c0_8 = arith.constant 0 : index
    %c0_9 = arith.constant 0 : index
    %27 = vector.load %arg3[%c0_8, %c0_9] : memref<1x128xf32, #tpu.memory_space<vmem>>, vector<1x128xf32>
    %28 = vector.broadcast %27 : vector<1x128xf32> to vector<8x128xf32>
    %29 = arith.addf %26, %28 : vector<8x128xf32>
    %c0_10 = arith.constant 0 : index
    %c0_11 = arith.constant 0 : index
    %30 = vector.load %arg4[%c0_10, %c0_11] : memref<128x256xf32, #tpu.memory_space<vmem>>, vector<128x256xf32>
    %cst_12 = arith.constant dense<0.000000e+00> : vector<8x256xf32>
    %31 = tpu.matmul %29, %30, %cst_12 {dimension_numbers = #tpu.dot_dimension_numbers<[1], [0], [0], [1], [0, 0, 1, 1], [], []>} : vector<8x128xf32>, vector<128x256xf32>, vector<8x256xf32> -> vector<8x256xf32>
    %c0_13 = arith.constant 0 : index
    %c0_14 = arith.constant 0 : index
    %32 = vector.load %arg5[%c0_13, %c0_14] : memref<1x256xf32, #tpu.memory_space<vmem>>, vector<1x256xf32>
    %33 = vector.broadcast %32 : vector<1x256xf32> to vector<8x256xf32>
    %34 = arith.addf %31, %33 : vector<8x256xf32>
    %cst_15 = arith.constant 1.000000e-01 : f32
    %35 = vector.broadcast %cst_15 : f32 to vector<8x256xf32>
    %36 = arith.mulf %35, %34 : vector<8x256xf32>
    %37 = arith.maximumf %34, %36 : vector<8x256xf32>
    %c0_16 = arith.constant 0 : index
    %c0_17 = arith.constant 0 : index
    %38 = vector.load %arg6[%c0_16, %c0_17] : memref<256x384xf32, #tpu.memory_space<vmem>>, vector<256x384xf32>
    %cst_18 = arith.constant dense<0.000000e+00> : vector<8x384xf32>
    %39 = tpu.matmul %37, %38, %cst_18 {dimension_numbers = #tpu.dot_dimension_numbers<[1], [0], [0], [1], [0, 0, 1, 1], [], []>} : vector<8x256xf32>, vector<256x384xf32>, vector<8x384xf32> -> vector<8x384xf32>
    %c0_19 = arith.constant 0 : index
    %c0_20 = arith.constant 0 : index
    %40 = vector.load %arg7[%c0_19, %c0_20] : memref<1x384xf32, #tpu.memory_space<vmem>>, vector<1x384xf32>
    %41 = vector.broadcast %40 : vector<1x384xf32> to vector<8x384xf32>
    %42 = arith.addf %39, %41 : vector<8x384xf32>
    %c0_21 = arith.constant 0 : index
    %c0_22 = arith.constant 0 : index
    %43 = vector.load %arg8[%c0_21, %c0_22] : memref<384x256xf32, #tpu.memory_space<vmem>>, vector<384x256xf32>
    %cst_23 = arith.constant dense<0.000000e+00> : vector<8x256xf32>
    %44 = tpu.matmul %42, %43, %cst_23 {dimension_numbers = #tpu.dot_dimension_numbers<[1], [0], [0], [1], [0, 0, 1, 1], [], []>} : vector<8x384xf32>, vector<384x256xf32>, vector<8x256xf32> -> vector<8x256xf32>
    %c0_24 = arith.constant 0 : index
    %c0_25 = arith.constant 0 : index
    %45 = vector.load %arg9[%c0_24, %c0_25] : memref<1x256xf32, #tpu.memory_space<vmem>>, vector<1x256xf32>
    %46 = vector.broadcast %45 : vector<1x256xf32> to vector<8x256xf32>
    %47 = arith.addf %44, %46 : vector<8x256xf32>
    %cst_26 = arith.constant 1.000000e-01 : f32
    %48 = vector.broadcast %cst_26 : f32 to vector<8x256xf32>
    %49 = arith.mulf %48, %47 : vector<8x256xf32>
    %50 = arith.maximumf %47, %49 : vector<8x256xf32>
    %c0_27 = arith.constant 0 : index
    %c0_28 = arith.constant 0 : index
    %51 = vector.load %arg10[%c0_27, %c0_28] : memref<256x128xf32, #tpu.memory_space<vmem>>, vector<256x128xf32>
    %cst_29 = arith.constant dense<0.000000e+00> : vector<8x128xf32>
    %52 = tpu.matmul %50, %51, %cst_29 {dimension_numbers = #tpu.dot_dimension_numbers<[1], [0], [0], [1], [0, 0, 1, 1], [], []>} : vector<8x256xf32>, vector<256x128xf32>, vector<8x128xf32> -> vector<8x128xf32>
    %c0_30 = arith.constant 0 : index
    %c0_31 = arith.constant 0 : index
    %53 = vector.load %arg11[%c0_30, %c0_31] : memref<1x128xf32, #tpu.memory_space<vmem>>, vector<1x128xf32>
    %54 = vector.broadcast %53 : vector<1x128xf32> to vector<8x128xf32>
    %55 = arith.addf %52, %54 : vector<8x128xf32>
    %c0_32 = arith.constant 0 : index
    %c0_33 = arith.constant 0 : index
    %56 = vector.load %arg12[%c0_32, %c0_33] : memref<8x128xf32, #tpu.memory_space<vmem>>, vector<8x128xf32>
    tpu.vector_store %arg12[%c0_32, %c0_33], %55 {strides = array<i32>} : memref<8x128xf32, #tpu.memory_space<vmem>>, vector<8x128xf32>,
    %57 = math.absf %42 : vector<8x384xf32>
    %cst_34 = arith.constant dense<0.000000e+00> : vector<384xf32>
    %58 = vector.multi_reduction <add>, %57, %cst_34 [0] : vector<8x384xf32> to vector<384xf32>
    %59 = vector.shape_cast %58 : vector<384xf32> to vector<1x384xf32>
    %60 = vector.shape_cast %59 : vector<1x384xf32> to vector<1x1x384xf32>
    %c0_35 = arith.constant 0 : index
    %c0_36 = arith.constant 0 : index
    %c0_37 = arith.constant 0 : index
    %61 = vector.load %arg13[%c0_35, %c0_36, %c0_37] : memref<1x1x384xf32, #tpu.memory_space<vmem>>, vector<1x1x384xf32>
    tpu.vector_store %arg13[%c0_35, %c0_36, %c0_37], %60 {strides = array<i32>} : memref<1x1x384xf32, #tpu.memory_space<vmem>>, vector<1x1x384xf32>,
    return
  }
  func.func @transform_0(%arg0: i32) -> (i32, i32) {
    %c0_i32 = arith.constant 0 : i32
    %c0_i32_0 = arith.constant 0 : i32
    return %arg0, %c0_i32 : i32, i32
  }
  func.func @transform_1(%arg0: i32) -> (i32, i32) {
    %c0_i32 = arith.constant 0 : i32
    %c0_i32_0 = arith.constant 0 : i32
    %c0_i32_1 = arith.constant 0 : i32
    return %c0_i32, %c0_i32_0 : i32, i32
  }
  func.func @transform_2(%arg0: i32) -> (i32, i32) {
    %c0_i32 = arith.constant 0 : i32
    %c0_i32_0 = arith.constant 0 : i32
    %c0_i32_1 = arith.constant 0 : i32
    return %c0_i32, %c0_i32_0 : i32, i32
  }
  func.func @transform_3(%arg0: i32) -> (i32, i32) {
    %c0_i32 = arith.constant 0 : i32
    %c0_i32_0 = arith.constant 0 : i32
    %c0_i32_1 = arith.constant 0 : i32
    return %c0_i32, %c0_i32_0 : i32, i32
  }
  func.func @transform_4(%arg0: i32) -> (i32, i32) {
    %c0_i32 = arith.constant 0 : i32
    %c0_i32_0 = arith.constant 0 : i32
    %c0_i32_1 = arith.constant 0 : i32
    return %c0_i32, %c0_i32_0 : i32, i32
  }
  func.func @transform_5(%arg0: i32) -> (i32, i32) {
    %c0_i32 = arith.constant 0 : i32
    %c0_i32_0 = arith.constant 0 : i32
    %c0_i32_1 = arith.constant 0 : i32
    return %c0_i32, %c0_i32_0 : i32, i32
  }
  func.func @transform_6(%arg0: i32) -> (i32, i32) {
    %c0_i32 = arith.constant 0 : i32
    %c0_i32_0 = arith.constant 0 : i32
    %c0_i32_1 = arith.constant 0 : i32
    return %c0_i32, %c0_i32_0 : i32, i32
  }
  func.func @transform_7(%arg0: i32) -> (i32, i32) {
    %c0_i32 = arith.constant 0 : i32
    %c0_i32_0 = arith.constant 0 : i32
    %c0_i32_1 = arith.constant 0 : i32
    return %c0_i32, %c0_i32_0 : i32, i32
  }
  func.func @transform_8(%arg0: i32) -> (i32, i32) {
    %c0_i32 = arith.constant 0 : i32
    %c0_i32_0 = arith.constant 0 : i32
    %c0_i32_1 = arith.constant 0 : i32
    return %c0_i32, %c0_i32_0 : i32, i32
  }
  func.func @transform_9(%arg0: i32) -> (i32, i32) {
    %c0_i32 = arith.constant 0 : i32
    %c0_i32_0 = arith.constant 0 : i32
    %c0_i32_1 = arith.constant 0 : i32
    return %c0_i32, %c0_i32_0 : i32, i32
  }
  func.func @transform_10(%arg0: i32) -> (i32, i32) {
    %c0_i32 = arith.constant 0 : i32
    %c0_i32_0 = arith.constant 0 : i32
    %c0_i32_1 = arith.constant 0 : i32
    return %c0_i32, %c0_i32_0 : i32, i32
  }
  func.func @transform_11(%arg0: i32) -> (i32, i32) {
    %c0_i32 = arith.constant 0 : i32
    %c0_i32_0 = arith.constant 0 : i32
    return %arg0, %c0_i32 : i32, i32
  }
  func.func @transform_12(%arg0: i32) -> (i32, i32, i32) {
    %c0_i32 = arith.constant 0 : i32
    %c0_i32_0 = arith.constant 0 : i32
    %c0_i32_1 = arith.constant 0 : i32
    return %arg0, %c0_i32, %c0_i32_0 : i32, i32, i32
  }
}

module attributes {stable_mosaic.version = 11 : i64} {
  func.func @sae_kernel(%arg0: i32, %arg1: memref<8x128xf32, #tpu.memory_space<vmem>>, %arg2: memref<1x128xf32, #tpu.memory_space<vmem>>, %arg3: memref<1x128xf32, #tpu.memory_space<vmem>>, %arg4: memref<128x256xf32, #tpu.memory_space<vmem>>, %arg5: memref<1x256xf32, #tpu.memory_space<vmem>>, %arg6: memref<256x384xf32, #tpu.memory_space<vmem>>, %arg7: memref<1x384xf32, #tpu.memory_space<vmem>>, %arg8: memref<384x256xf32, #tpu.memory_space<vmem>>, %arg9: memref<1x256xf32, #tpu.memory_space<vmem>>, %arg10: memref<256x128xf32, #tpu.memory_space<vmem>>, %arg11: memref<1x128xf32, #tpu.memory_space<vmem>>, %arg12: memref<8x128xf32, #tpu.memory_space<vmem>>, %arg13: memref<1x1x384xf32, #tpu.memory_space<vmem>>) attributes {dimension_semantics = [#tpu.dimension_semantics<parallel>], iteration_bounds = array<i64: 1>, scalar_prefetch = 0 : i64, scratch_operands = 0 : i64, tpu.core_type = #tpu.core_type<tc>, window_params = [{transform_indices = @transform_0, window_bounds = array<i64: 8, 128>}, {pipeline_mode = #tpu.pipeline_mode<synchronous>, transform_indices = @transform_1, window_bounds = array<i64: 1, 128>}, {pipeline_mode = #tpu.pipeline_mode<synchronous>, transform_indices = @transform_2, window_bounds = array<i64: 1, 128>}, {pipeline_mode = #tpu.pipeline_mode<synchronous>, transform_indices = @transform_3, window_bounds = array<i64: 128, 256>}, {pipeline_mode = #tpu.pipeline_mode<synchronous>, transform_indices = @transform_4, window_bounds = array<i64: 1, 256>}, {pipeline_mode = #tpu.pipeline_mode<synchronous>, transform_indices = @transform_5, window_bounds = array<i64: 256, 384>}, {pipeline_mode = #tpu.pipeline_mode<synchronous>, transform_indices = @transform_6, window_bounds = array<i64: 1, 384>}, {pipeline_mode = #tpu.pipeline_mode<synchronous>, transform_indices = @transform_7, window_bounds = array<i64: 384, 256>}, {pipeline_mode = #tpu.pipeline_mode<synchronous>, transform_indices = @transform_8, window_bounds = array<i64: 1, 256>}, {pipeline_mode = #tpu.pipeline_mode<synchronous>, transform_indices = @transform_9, window_bounds = array<i64: 256, 128>}, {pipeline_mode = #tpu.pipeline_mode<synchronous>, transform_indices = @transform_10, window_bounds = array<i64: 1, 128>}, {transform_indices = @transform_11, window_bounds = array<i64: 8, 128>}, {transform_indices = @transform_12, window_bounds = array<i64: 1, 1, 384>}]} {
    %c0 = arith.constant 0 : index
    %c0_0 = arith.constant 0 : index
    %0 = vector.load %arg1[%c0, %c0_0] : memref<8x128xf32, #tpu.memory_space<vmem>>, vector<8x128xf32>
    %cst = arith.constant dense<0.000000e+00> : vector<8xf32>
    %1 = vector.multi_reduction <add>, %0, %cst [1] : vector<8x128xf32> to vector<8xf32>
    %2 = vector.shape_cast %1 : vector<8xf32> to vector<8x1xf32>
    %cst_1 = arith.constant 3.125000e-02 : f32
    %3 = vector.broadcast %cst_1 : f32 to vector<8x1xf32>
    %4 = arith.mulf %2, %3 : vector<8x1xf32>
    %5 = vector.broadcast %4 : vector<8x1xf32> to vector<8x128xf32>
    %6 = arith.subf %0, %5 : vector<8x128xf32>
    %7 = tpu.iota {dimensions = array<i32: 1>} : vector<1x128xi32>
    %c32_i32 = arith.constant 32 : i32
    %8 = vector.broadcast %c32_i32 : i32 to vector<1x128xi32>
    %9 = arith.cmpi slt, %7, %8 : vector<1x128xi32>
    %cst_2 = arith.constant 0.000000e+00 : f32
    %10 = vector.shape_cast %9 : vector<1x128xi1> to vector<1x128xi1>
    %11 = vector.broadcast %10 : vector<1x128xi1> to vector<8x128xi1>
    %12 = vector.broadcast %cst_2 : f32 to vector<8x128xf32>
    %13 = arith.select %11, %6, %12 : vector<8x128xi1>, vector<8x128xf32>
    %14 = arith.mulf %13, %13 : vector<8x128xf32>
    %cst_3 = arith.constant dense<0.000000e+00> : vector<8xf32>
    %15 = vector.multi_reduction <add>, %14, %cst_3 [1] : vector<8x128xf32> to vector<8xf32>
    %16 = vector.shape_cast %15 : vector<8xf32> to vector<8x1xf32>
    %cst_4 = arith.constant 3.125000e-02 : f32
    %17 = vector.broadcast %cst_4 : f32 to vector<8x1xf32>
    %18 = arith.mulf %16, %17 : vector<8x1xf32>
    %cst_5 = arith.constant 9.99999974E-6 : f32
    %19 = vector.broadcast %cst_5 : f32 to vector<8x1xf32>
    %20 = arith.addf %18, %19 : vector<8x1xf32>
    %21 = math.rsqrt %20 : vector<8x1xf32>
    %22 = vector.broadcast %21 : vector<8x1xf32> to vector<8x128xf32>
    %23 = arith.mulf %13, %22 : vector<8x128xf32>
    %c0_6 = arith.constant 0 : index
    %c0_7 = arith.constant 0 : index
    %24 = vector.load %arg2[%c0_6, %c0_7] : memref<1x128xf32, #tpu.memory_space<vmem>>, vector<1x128xf32>
    %25 = vector.broadcast %24 : vector<1x128xf32> to vector<8x128xf32>
    %26 = arith.mulf %23, %25 : vector<8x128xf32>
    %c0_8 = arith.constant 0 : index
    %c0_9 = arith.constant 0 : index
    %27 = vector.load %arg3[%c0_8, %c0_9] : memref<1x128xf32, #tpu.memory_space<vmem>>, vector<1x128xf32>
    %28 = vector.broadcast %27 : vector<1x128xf32> to vector<8x128xf32>
    %29 = arith.addf %26, %28 : vector<8x128xf32>
    %c0_10 = arith.constant 0 : index
    %c0_11 = arith.constant 0 : index
    %30 = vector.load %arg4[%c0_10, %c0_11] : memref<128x256xf32, #tpu.memory_space<vmem>>, vector<128x256xf32>
    %cst_12 = arith.constant dense<0.000000e+00> : vector<8x256xf32>
    %31 = tpu.matmul %29, %30, %cst_12 {dimension_numbers = #tpu.dot_dimension_numbers<[1], [0], [0], [1], [0, 0, 1, 1], [], []>} : vector<8x128xf32>, vector<128x256xf32>, vector<8x256xf32> -> vector<8x256xf32>
    %c0_13 = arith.constant 0 : index
    %c0_14 = arith.constant 0 : index
    %32 = vector.load %arg5[%c0_13, %c0_14] : memref<1x256xf32, #tpu.memory_space<vmem>>, vector<1x256xf32>
    %33 = vector.broadcast %32 : vector<1x256xf32> to vector<8x256xf32>
    %34 = arith.addf %31, %33 : vector<8x256xf32>
    %cst_15 = arith.constant 1.000000e-01 : f32
    %35 = vector.broadcast %cst_15 : f32 to vector<8x256xf32>
    %36 = arith.mulf %35, %34 : vector<8x256xf32>
    %37 = arith.maximumf %34, %36 : vector<8x256xf32>
    %c0_16 = arith.constant 0 : index
    %c0_17 = arith.constant 0 : index
    %38 = vector.load %arg6[%c0_16, %c0_17] : memref<256x384xf32, #tpu.memory_space<vmem>>, vector<256x384xf32>
    %cst_18 = arith.constant dense<0.000000e+00> : vector<8x384xf32>
    %39 = tpu.matmul %37, %38, %cst_18 {dimension_numbers = #tpu.dot_dimension_numbers<[1], [0], [0], [1], [0, 0, 1, 1], [], []>} : vector<8x256xf32>, vector<256x384xf32>, vector<8x384xf32> -> vector<8x384xf32>
    %c0_19 = arith.constant 0 : index
    %c0_20 = arith.constant 0 : index
    %40 = vector.load %arg7[%c0_19, %c0_20] : memref<1x384xf32, #tpu.memory_space<vmem>>, vector<1x384xf32>
    %41 = vector.broadcast %40 : vector<1x384xf32> to vector<8x384xf32>
    %42 = arith.addf %39, %41 : vector<8x384xf32>
    %c0_21 = arith.constant 0 : index
    %c0_22 = arith.constant 0 : index
    %43 = vector.load %arg8[%c0_21, %c0_22] : memref<384x256xf32, #tpu.memory_space<vmem>>, vector<384x256xf32>
    %cst_23 = arith.constant dense<0.000000e+00> : vector<8x256xf32>
    %44 = tpu.matmul %42, %43, %cst_23 {dimension_numbers = #tpu.dot_dimension_numbers<[1], [0], [0], [1], [0, 0, 1, 1], [], []>} : vector<8x384xf32>, vector<384x256xf32>, vector<8x256xf32> -> vector<8x256xf32>
    %c0_24 = arith.constant 0 : index
    %c0_25 = arith.constant 0 : index
    %45 = vector.load %arg9[%c0_24, %c0_25] : memref<1x256xf32, #tpu.memory_space<vmem>>, vector<1x256xf32>
    %46 = vector.broadcast %45 : vector<1x256xf32> to vector<8x256xf32>
    %47 = arith.addf %44, %46 : vector<8x256xf32>
    %cst_26 = arith.constant 1.000000e-01 : f32
    %48 = vector.broadcast %cst_26 : f32 to vector<8x256xf32>
    %49 = arith.mulf %48, %47 : vector<8x256xf32>
    %50 = arith.maximumf %47, %49 : vector<8x256xf32>
    %c0_27 = arith.constant 0 : index
    %c0_28 = arith.constant 0 : index
    %51 = vector.load %arg10[%c0_27, %c0_28] : memref<256x128xf32, #tpu.memory_space<vmem>>, vector<256x128xf32>
    %cst_29 = arith.constant dense<0.000000e+00> : vector<8x128xf32>
    %52 = tpu.matmul %50, %51, %cst_29 {dimension_numbers = #tpu.dot_dimension_numbers<[1], [0], [0], [1], [0, 0, 1, 1], [], []>} : vector<8x256xf32>, vector<256x128xf32>, vector<8x128xf32> -> vector<8x128xf32>
    %c0_30 = arith.constant 0 : index
    %c0_31 = arith.constant 0 : index
    %53 = vector.load %arg11[%c0_30, %c0_31] : memref<1x128xf32, #tpu.memory_space<vmem>>, vector<1x128xf32>
    %54 = vector.broadcast %53 : vector<1x128xf32> to vector<8x128xf32>
    %55 = arith.addf %52, %54 : vector<8x128xf32>
    %c0_32 = arith.constant 0 : index
    %c0_33 = arith.constant 0 : index
    %56 = vector.load %arg12[%c0_32, %c0_33] : memref<8x128xf32, #tpu.memory_space<vmem>>, vector<8x128xf32>
    tpu.vector_store %arg12[%c0_32, %c0_33], %55 {strides = array<i32>} : memref<8x128xf32, #tpu.memory_space<vmem>>, vector<8x128xf32>,
    %57 = math.absf %42 : vector<8x384xf32>
    %cst_34 = arith.constant dense<0.000000e+00> : vector<384xf32>
    %58 = vector.multi_reduction <add>, %57, %cst_34 [0] : vector<8x384xf32> to vector<384xf32>
    %59 = vector.shape_cast %58 : vector<384xf32> to vector<1x384xf32>
    %60 = vector.shape_cast %59 : vector<1x384xf32> to vector<1x1x384xf32>
    %c0_35 = arith.constant 0 : index
    %c0_36 = arith.constant 0 : index
    %c0_37 = arith.constant 0 : index
    %61 = vector.load %arg13[%c0_35, %c0_36, %c0_37] : memref<1x1x384xf32, #tpu.memory_space<vmem>>, vector<1x1x384xf32>
    tpu.vector_store %arg13[%c0_35, %c0_36, %c0_37], %60 {strides = array<i32>} : memref<1x1x384xf32, #tpu.memory_space<vmem>>, vector<1x1x384xf32>,
    return
  }
  func.func @transform_0(%arg0: i32) -> (i32, i32) {
    %c0_i32 = arith.constant 0 : i32
    %c0_i32_0 = arith.constant 0 : i32
    return %arg0, %c0_i32 : i32, i32
  }
  func.func @transform_1(%arg0: i32) -> (i32, i32) {
    %c0_i32 = arith.constant 0 : i32
    %c0_i32_0 = arith.constant 0 : i32
    %c0_i32_1 = arith.constant 0 : i32
    return %c0_i32, %c0_i32_0 : i32, i32
  }
  func.func @transform_2(%arg0: i32) -> (i32, i32) {
    %c0_i32 = arith.constant 0 : i32
    %c0_i32_0 = arith.constant 0 : i32
    %c0_i32_1 = arith.constant 0 : i32
    return %c0_i32, %c0_i32_0 : i32, i32
  }
  func.func @transform_3(%arg0: i32) -> (i32, i32) {
    %c0_i32 = arith.constant 0 : i32
    %c0_i32_0 = arith.constant 0 : i32
    %c0_i32_1 = arith.constant 0 : i32
    return %c0_i32, %c0_i32_0 : i32, i32
  }
  func.func @transform_4(%arg0: i32) -> (i32, i32) {
    %c0_i32 = arith.constant 0 : i32
    %c0_i32_0 = arith.constant 0 : i32
    %c0_i32_1 = arith.constant 0 : i32
    return %c0_i32, %c0_i32_0 : i32, i32
  }
  func.func @transform_5(%arg0: i32) -> (i32, i32) {
    %c0_i32 = arith.constant 0 : i32
    %c0_i32_0 = arith.constant 0 : i32
    %c0_i32_1 = arith.constant 0 : i32
    return %c0_i32, %c0_i32_0 : i32, i32
  }
  func.func @transform_6(%arg0: i32) -> (i32, i32) {
    %c0_i32 = arith.constant 0 : i32
    %c0_i32_0 = arith.constant 0 : i32
    %c0_i32_1 = arith.constant 0 : i32
    return %c0_i32, %c0_i32_0 : i32, i32
  }
  func.func @transform_7(%arg0: i32) -> (i32, i32) {
    %c0_i32 = arith.constant 0 : i32
    %c0_i32_0 = arith.constant 0 : i32
    %c0_i32_1 = arith.constant 0 : i32
    return %c0_i32, %c0_i32_0 : i32, i32
  }
  func.func @transform_8(%arg0: i32) -> (i32, i32) {
    %c0_i32 = arith.constant 0 : i32
    %c0_i32_0 = arith.constant 0 : i32
    %c0_i32_1 = arith.constant 0 : i32
    return %c0_i32, %c0_i32_0 : i32, i32
  }
  func.func @transform_9(%arg0: i32) -> (i32, i32) {
    %c0_i32 = arith.constant 0 : i32
    %c0_i32_0 = arith.constant 0 : i32
    %c0_i32_1 = arith.constant 0 : i32
    return %c0_i32, %c0_i32_0 : i32, i32
  }
  func.func @transform_10(%arg0: i32) -> (i32, i32) {
    %c0_i32 = arith.constant 0 : i32
    %c0_i32_0 = arith.constant 0 : i32
    %c0_i32_1 = arith.constant 0 : i32
    return %c0_i32, %c0_i32_0 : i32, i32
  }
  func.func @transform_11(%arg0: i32) -> (i32, i32) {
    %c0_i32 = arith.constant 0 : i32
    %c0_i32_0 = arith.constant 0 : i32
    return %arg0, %c0_i32 : i32, i32
  }
  func.func @transform_12(%arg0: i32) -> (i32, i32, i32) {
    %c0_i32 = arith.constant 0 : i32
    %c0_i32_0 = arith.constant 0 : i32
    %c0_i32_1 = arith.constant 0 : i32
    return %arg0, %c0_i32, %c0_i32_0 : i32, i32, i32
  }
}

</mosaic_0001>

<llo_original>
// kernel: robust_sparse_autoencoder_forward.1
$region0: #{robust_sparse_autoencoder_forward.1}
  #allocation0 [shape = 'u32[]', space=smem, size = 0x4, offset = 0x4, fixed_abs, tag = 'smem constant byte address 0x4 - core index']
  #allocation1 [shape = 'u32[72,128]{1,0:T(1,128)}', space=vmem, size = 0x9000, scoped, tag = 'internal scratch']
  %s0 = inlined_call_operand.vmem [shape: f32[8,128], index: 0, kind: input, shape index: {}]
  %s1 = inlined_call_operand.vmem [shape: f32[1,128], index: 1, kind: input, shape index: {}]
  %s2 = inlined_call_operand.vmem [shape: f32[1,128], index: 2, kind: input, shape index: {}]
  %s3 = inlined_call_operand.vmem [shape: f32[128,256], index: 3, kind: input, shape index: {}]
  %s4 = inlined_call_operand.vmem [shape: f32[1,256], index: 4, kind: input, shape index: {}]
  %s5 = inlined_call_operand.vmem [shape: f32[256,384], index: 5, kind: input, shape index: {}]
  %s6 = inlined_call_operand.vmem [shape: f32[1,384], index: 6, kind: input, shape index: {}]
  %s7 = inlined_call_operand.vmem [shape: f32[384,256], index: 7, kind: input, shape index: {}]
  %s8 = inlined_call_operand.vmem [shape: f32[1,256], index: 8, kind: input, shape index: {}]
  %s9 = inlined_call_operand.vmem [shape: f32[256,128], index: 9, kind: input, shape index: {}]
  %s10 = inlined_call_operand.vmem [shape: f32[1,128], index: 10, kind: input, shape index: {}]
  %s11 = inlined_call_operand.hbm [shape: f32[8,128], index: 11, kind: output, shape index: {0}]
  %s12 = inlined_call_operand.vmem [shape: f32[1,1,384], index: 12, kind: output, shape index: {1}]
  %13 = xla_tuple %s11, %s12
  %s14 = sld [smem:[#allocation0]]
  $region62: #{robust_sparse_autoencoder_forward.1} parent=0
    _
  %s16 = ssub.s32 1, %s14
  %s17 = scalar_select 0, %s16, %s14
  $region1: #{robust_sparse_autoencoder_forward.1} parent=0
    #allocation2 [shape = 'u8[4096]{0}', space=vmem, size = 0x1000, scoped, tag = 'output window, operand 0, single buffered']
    #allocation3 [shape = 's32[1]{0}', space=sflag, size = 0x4, scoped, tag = 'scoped memory for robust_sparse_autoencoder_forward.1']
    %18 = vsyncpa [#allocation3], 0
    // Predicated region
    $region2: #{robust_sparse_autoencoder_forward.1} parent=1 // pred_check
      _
    $region3: #{robust_sparse_autoencoder_forward.1} parent=1 // pred_check_branch
      %20 = sbr.rel (0) target = $region5
    $region4: #{robust_sparse_autoencoder_forward.1} parent=1 // pred_region
      _
    $region5: #{robust_sparse_autoencoder_forward.1} parent=1 // pred_fallthru
      _
    // Predicated region
    $region6: #{robust_sparse_autoencoder_forward.1} parent=1 // pred_check
      _
    $region7: #{robust_sparse_autoencoder_forward.1} parent=1 // pred_check_branch
      %22 = sbr.rel (0) target = $region9
    $region8: #{robust_sparse_autoencoder_forward.1} parent=1 // pred_region
      _
    $region9: #{robust_sparse_autoencoder_forward.1} parent=1 // pred_fallthru
      _
    // Predicated region
    $region10: #{robust_sparse_autoencoder_forward.1} parent=1 // pred_check
      _
    $region11: #{robust_sparse_autoencoder_forward.1} parent=1 // pred_check_branch
      %24 = sbr.rel (0) target = $region13
    $region12: #{robust_sparse_autoencoder_forward.1} parent=1 // pred_region
      _
    $region13: #{robust_sparse_autoencoder_forward.1} parent=1 // pred_fallthru
      _
    // Predicated region
    $region14: #{robust_sparse_autoencoder_forward.1} parent=1 // pred_check
      _
    $region15: #{robust_sparse_autoencoder_forward.1} parent=1 // pred_check_branch
      %26 = sbr.rel (0) target = $region17
    $region16: #{robust_sparse_autoencoder_forward.1} parent=1 // pred_region
      _
    $region17: #{robust_sparse_autoencoder_forward.1} parent=1 // pred_fallthru
      _
    // Predicated region
    $region18: #{robust_sparse_autoencoder_forward.1} parent=1 // pred_check
      _
    $region19: #{robust_sparse_autoencoder_forward.1} parent=1 // pred_check_branch
      %28 = sbr.rel (0) target = $region21
    $region20: #{robust_sparse_autoencoder_forward.1} parent=1 // pred_region
      _
    $region21: #{robust_sparse_autoencoder_forward.1} parent=1 // pred_fallthru
      _
    // Predicated region
    $region22: #{robust_sparse_autoencoder_forward.1} parent=1 // pred_check
      _
    $region23: #{robust_sparse_autoencoder_forward.1} parent=1 // pred_check_branch
      %30 = sbr.rel (0) target = $region25
    $region24: #{robust_sparse_autoencoder_forward.1} parent=1 // pred_region
      _
    $region25: #{robust_sparse_autoencoder_forward.1} parent=1 // pred_fallthru
      _
    // Predicated region
    $region26: #{robust_sparse_autoencoder_forward.1} parent=1 // pred_check
      _
    $region27: #{robust_sparse_autoencoder_forward.1} parent=1 // pred_check_branch
      %32 = sbr.rel (0) target = $region29
    $region28: #{robust_sparse_autoencoder_forward.1} parent=1 // pred_region
      _
    $region29: #{robust_sparse_autoencoder_forward.1} parent=1 // pred_fallthru
      _
    // Predicated region
    $region30: #{robust_sparse_autoencoder_forward.1} parent=1 // pred_check
      _
    $region31: #{robust_sparse_autoencoder_forward.1} parent=1 // pred_check_branch
      %34 = sbr.rel (0) target = $region33
    $region32: #{robust_sparse_autoencoder_forward.1} parent=1 // pred_region
      _
    $region33: #{robust_sparse_autoencoder_forward.1} parent=1 // pred_fallthru
      _
    // Predicated region
    $region34: #{robust_sparse_autoencoder_forward.1} parent=1 // pred_check
      _
    $region35: #{robust_sparse_autoencoder_forward.1} parent=1 // pred_check_branch
      %36 = sbr.rel (0) target = $region37
    $region36: #{robust_sparse_autoencoder_forward.1} parent=1 // pred_region
      _
    $region37: #{robust_sparse_autoencoder_forward.1} parent=1 // pred_fallthru
      _
    // Predicated region
    $region38: #{robust_sparse_autoencoder_forward.1} parent=1 // pred_check
      _
    $region39: #{robust_sparse_autoencoder_forward.1} parent=1 // pred_check_branch
      %38 = sbr.rel (0) target = $region41
    $region40: #{robust_sparse_autoencoder_forward.1} parent=1 // pred_region
      _
    $region41: #{robust_sparse_autoencoder_forward.1} parent=1 // pred_fallthru
      _
    // Predicated region
    $region42: #{robust_sparse_autoencoder_forward.1} parent=1 // pred_check
      _
    $region43: #{robust_sparse_autoencoder_forward.1} parent=1 // pred_check_branch
      %40 = sbr.rel (0) target = $region45
    $region44: #{robust_sparse_autoencoder_forward.1} parent=1 // pred_region
      _
    $region45: #{robust_sparse_autoencoder_forward.1} parent=1 // pred_fallthru
      _
    %v41 = vld [vmem:[%s0] sm:$0xff]
    %42 = vadd.xlane.f32.xlu0 %v41
    %v43 = vpop.xlane.xlu0 %42
    %v44 = vmul.f32 %v43, 0.03125
    %v45 = vsub.f32 %v41, %v44
    %v46 = vlaneseq
    %v47 = vand.u32 %v46, 127
    %vm48 = vcmp.lt.s32.totalorder %v47, 32
    %v49 = vsel %vm48, 1, 0
    %vm50 = vcmp.eq.s32.totalorder %v49, 1
    %v51 = vsel %vm50, %v45, 0.0
    %v52 = vmul.f32 %v51, %v51
    %53 = vadd.xlane.f32.xlu0 %v52
    %v54 = vpop.xlane.xlu0 %53
    %v55 = vmul.f32 %v54, 0.03125
    %v56 = vadd.f32 %v55, 1e-05
    %v57 = vrsqrt.pop %v56
    %v58 = vmul.f32 %v57, %v56
    %v59 = vmul.f32 %v58, %v57
    %v60 = vmul.f32 0.5, %v59
    %v61 = vsub.f32 1.5, %v60
    %v62 = vmul.f32 %v57, %v61
    %vm63 = vweird.f32 %v56
    %vm64 = vweird.f32 %v57
    %vm65 = vmor %vm63, %vm64
    %v66 = vsel %vm65, %v57, %v62
    %v67 = vmul.f32 %v51, %v66
    %v68 = vld [vmem:[%s1] sm:$0x1]
    %v70 = vperm.slane %v68, 0
    %v72 = vmul.f32 %v67, %v70
    %v73 = vld [vmem:[%s2] sm:$0x1]
    %v75 = vperm.slane %v73, 0
    %v77 = vadd.f32 %v72, %v75
    %v78 = vld [vmem:[%s3] sm:$0xff]
    %v79 = vld [vmem:[%s3 + $0x8] sm:$0xff]
    %v80 = vld [vmem:[%s3 + $0x10] sm:$0xff]
    %v81 = vld [vmem:[%s3 + $0x18] sm:$0xff]
    %v82 = vld [vmem:[%s3 + $0x20] sm:$0xff]
    %v83 = vld [vmem:[%s3 + $0x28] sm:$0xff]
    %v84 = vld [vmem:[%s3 + $0x30] sm:$0xff]
    %v85 = vld [vmem:[%s3 + $0x38] sm:$0xff]
    %v86 = vld [vmem:[%s3 + $0x40] sm:$0xff]
    %v87 = vld [vmem:[%s3 + $0x48] sm:$0xff]
    %v88 = vld [vmem:[%s3 + $0x50] sm:$0xff]
    %v89 = vld [vmem:[%s3 + $0x58] sm:$0xff]
    %v90 = vld [vmem:[%s3 + $0x60] sm:$0xff]
    %v91 = vld [vmem:[%s3 + $0x68] sm:$0xff]
    %v92 = vld [vmem:[%s3 + $0x70] sm:$0xff]
    %v93 = vld [vmem:[%s3 + $0x78] sm:$0xff]
    %v94 = vld [vmem:[%s3 + $0x80] sm:$0xff]
    %v95 = vld [vmem:[%s3 + $0x88] sm:$0xff]
    %v96 = vld [vmem:[%s3 + $0x90] sm:$0xff]
    %v97 = vld [vmem:[%s3 + $0x98] sm:$0xff]
    %v98 = vld [vmem:[%s3 + $0xa0] sm:$0xff]
    %v99 = vld [vmem:[%s3 + $0xa8] sm:$0xff]
    %v100 = vld [vmem:[%s3 + $0xb0] sm:$0xff]
    %v101 = vld [vmem:[%s3 + $0xb8] sm:$0xff]
    %v102 = vld [vmem:[%s3 + $0xc0] sm:$0xff]
    %v103 = vld [vmem:[%s3 + $0xc8] sm:$0xff]
    %v104 = vld [vmem:[%s3 + $0xd0] sm:$0xff]
    %v105 = vld [vmem:[%s3 + $0xd8] sm:$0xff]
    %v106 = vld [vmem:[%s3 + $0xe0] sm:$0xff]
    %v107 = vld [vmem:[%s3 + $0xe8] sm:$0xff]
    %v108 = vld [vmem:[%s3 + $0xf0] sm:$0xff]
    %v109 = vld [vmem:[%s3 + $0xf8] sm:$0xff]
    %v110 = vld [vmem:[%s4] sm:$0x3]
    %v112 = vperm.slane %v110, 0
    %v113 = vperm.slane %v110, 1
    %116 = vmatpush.msra.mxu0 %v108
    %117 = vmatpush.msra.mxu0 %v106
    %118 = vmatpush.msra.mxu0 %v104
    %119 = vmatpush.msra.mxu0 %v102
    %120 = vmatpush.msra.mxu0 %v100
    %121 = vmatpush.msra.mxu0 %v98
    %122 = vmatpush.msra.mxu0 %v96
    %123 = vmatpush.msra.mxu0 %v94
    %124 = vmatpush.msra.mxu0 %v92
    %125 = vmatpush.msra.mxu0 %v90
    %126 = vmatpush.msra.mxu0 %v88
    %127 = vmatpush.msra.mxu0 %v86
    %128 = vmatpush.msra.mxu0 %v84
    %129 = vmatpush.msra.mxu0 %v82
    %130 = vmatpush.msra.mxu0 %v80
    %131 = vmatpush.msra.mxu0 %v78
    %132 = vmatmul.f32.gmra.mxu0 %v77
    %v133 = vpop.f32.mrf.mxu0
    %v134 = vadd.f32 %v112, %v133
    %135 = vdwg.mxu0
    %136 = vmatpush.msra.mxu0 %v109
    %137 = vmatpush.msra.mxu0 %v107
    %138 = vmatpush.msra.mxu0 %v105
    %139 = vmatpush.msra.mxu0 %v103
    %140 = vmatpush.msra.mxu0 %v101
    %141 = vmatpush.msra.mxu0 %v99
    %142 = vmatpush.msra.mxu0 %v97
    %143 = vmatpush.msra.mxu0 %v95
    %144 = vmatpush.msra.mxu0 %v93
    %145 = vmatpush.msra.mxu0 %v91
    %146 = vmatpush.msra.mxu0 %v89
    %147 = vmatpush.msra.mxu0 %v87
    %148 = vmatpush.msra.mxu0 %v85
    %149 = vmatpush.msra.mxu0 %v83
    %150 = vmatpush.msra.mxu0 %v81
    %151 = vmatpush.msra.mxu0 %v79
    %152 = vmatmul.f32.gmra.mxu0 %v77
    %v153 = vpop.f32.mrf.mxu0
    %v154 = vadd.f32 %v113, %v153
    %155 = vdwg.mxu0
    %v156 = vmul.f32 %v134, 0.1
    %v157 = vmul.f32 %v154, 0.1
    %v158 = vmax.f32 %v134, %v156
    %v159 = vmax.f32 %v154, %v157
    %v160 = vld [vmem:[%s5] sm:$0xff]
    %v161 = vld [vmem:[%s5 + $0x8] sm:$0xff]
    %v162 = vld [vmem:[%s5 + $0x10] sm:$0xff]
    %v163 = vld [vmem:[%s5 + $0x18] sm:$0xff]
    %v164 = vld [vmem:[%s5 + $0x20] sm:$0xff]
    %v165 = vld [vmem:[%s5 + $0x28] sm:$0xff]
    %v166 = vld [vmem:[%s5 + $0x30] sm:$0xff]
    %v167 = vld [vmem:[%s5 + $0x38] sm:$0xff]
    %v168 = vld [vmem:[%s5 + $0x40] sm:$0xff]
    %v169 = vld [vmem:[%s5 + $0x48] sm:$0xff]
    %v170 = vld [vmem:[%s5 + $0x50] sm:$0xff]
    %v171 = vld [vmem:[%s5 + $0x58] sm:$0xff]
    %v172 = vld [vmem:[%s5 + $0x60] sm:$0xff]
    %v173 = vld [vmem:[%s5 + $0x68] sm:$0xff]
    %v174 = vld [vmem:[%s5 + $0x70] sm:$0xff]
    %v175 = vld [vmem:[%s5 + $0x78] sm:$0xff]
    %v176 = vld [vmem:[%s5 + $0x80] sm:$0xff]
    %v177 = vld [vmem:[%s5 + $0x88] sm:$0xff]
    %v178 = vld [vmem:[%s5 + $0x90] sm:$0xff]
    %v179 = vld [vmem:[%s5 + $0x98] sm:$0xff]
    %v180 = vld [vmem:[%s5 + $0xa0] sm:$0xff]
    %v181 = vld [vmem:[%s5 + $0xa8] sm:$0xff]
    %v182 = vld [vmem:[%s5 + $0xb0] sm:$0xff]
    %v183 = vld [vmem:[%s5 + $0xb8] sm:$0xff]
    %v184 = vld [vmem:[%s5 + $0xc0] sm:$0xff]
    %v185 = vld [vmem:[%s5 + $0xc8] sm:$0xff]
    %v186 = vld [vmem:[%s5 + $0xd0] sm:$0xff]
    %v187 = vld [vmem:[%s5 + $0xd8] sm:$0xff]
    %v188 = vld [vmem:[%s5 + $0xe0] sm:$0xff]
    %v189 = vld [vmem:[%s5 + $0xe8] sm:$0xff]
    %v190 = vld [vmem:[%s5 + $0xf0] sm:$0xff]
    %v191 = vld [vmem:[%s5 + $0xf8] sm:$0xff]
    %v192 = vld [vmem:[%s5 + $0x100] sm:$0xff]
    %v193 = vld [vmem:[%s5 + $0x108] sm:$0xff]
    %v194 = vld [vmem:[%s5 + $0x110] sm:$0xff]
    %v195 = vld [vmem:[%s5 + $0x118] sm:$0xff]
    %v196 = vld [vmem:[%s5 + $0x120] sm:$0xff]
    %v197 = vld [vmem:[%s5 + $0x128] sm:$0xff]
    %v198 = vld [vmem:[%s5 + $0x130] sm:$0xff]
    %v199 = vld [vmem:[%s5 + $0x138] sm:$0xff]
    %v200 = vld [vmem:[%s5 + $0x140] sm:$0xff]
    %v201 = vld [vmem:[%s5 + $0x148] sm:$0xff]
    %v202 = vld [vmem:[%s5 + $0x150] sm:$0xff]
    %v203 = vld [vmem:[%s5 + $0x158] sm:$0xff]
    %v204 = vld [vmem:[%s5 + $0x160] sm:$0xff]
    %v205 = vld [vmem:[%s5 + $0x168] sm:$0xff]
    %v206 = vld [vmem:[%s5 + $0x170] sm:$0xff]
    %v207 = vld [vmem:[%s5 + $0x178] sm:$0xff]
    %v208 = vld [vmem:[%s5 + $0x180] sm:$0xff]
    %v209 = vld [vmem:[%s5 + $0x188] sm:$0xff]
    %v210 = vld [vmem:[%s5 + $0x190] sm:$0xff]
    %v211 = vld [vmem:[%s5 + $0x198] sm:$0xff]
    %v212 = vld [vmem:[%s5 + $0x1a0] sm:$0xff]
    %v213 = vld [vmem:[%s5 + $0x1a8] sm:$0xff]
    %v214 = vld [vmem:[%s5 + $0x1b0] sm:$0xff]
    %v215 = vld [vmem:[%s5 + $0x1b8] sm:$0xff]
    %v216 = vld [vmem:[%s5 + $0x1c0] sm:$0xff]
    %v217 = vld [vmem:[%s5 + $0x1c8] sm:$0xff]
    %v218 = vld [vmem:[%s5 + $0x1d0] sm:$0xff]
    %v219 = vld [vmem:[%s5 + $0x1d8] sm:$0xff]
    %v220 = vld [vmem:[%s5 + $0x1e0] sm:$0xff]
    %v221 = vld [vmem:[%s5 + $0x1e8] sm:$0xff]
    %v222 = vld [vmem:[%s5 + $0x1f0] sm:$0xff]
    %v223 = vld [vmem:[%s5 + $0x1f8] sm:$0xff]
    %v224 = vld [vmem:[%s5 + $0x200] sm:$0xff]
    %v225 = vld [vmem:[%s5 + $0x208] sm:$0xff]
    %v226 = vld [vmem:[%s5 + $0x210] sm:$0xff]
    %v227 = vld [vmem:[%s5 + $0x218] sm:$0xff]
    %v228 = vld [vmem:[%s5 + $0x220] sm:$0xff]
    %v229 = vld [vmem:[%s5 + $0x228] sm:$0xff]
    %v230 = vld [vmem:[%s5 + $0x230] sm:$0xff]
    %v231 = vld [vmem:[%s5 + $0x238] sm:$0xff]
    %v232 = vld [vmem:[%s5 + $0x240] sm:$0xff]
    %v233 = vld [vmem:[%s5 + $0x248] sm:$0xff]
    %v234 = vld [vmem:[%s5 + $0x250] sm:$0xff]
    %v235 = vld [vmem:[%s5 + $0x258] sm:$0xff]
    %v236 = vld [vmem:[%s5 + $0x260] sm:$0xff]
    %v237 = vld [vmem:[%s5 + $0x268] sm:$0xff]
    %v238 = vld [vmem:[%s5 + $0x270] sm:$0xff]
    %v239 = vld [vmem:[%s5 + $0x278] sm:$0xff]
    %v240 = vld [vmem:[%s5 + $0x280] sm:$0xff]
    %v241 = vld [vmem:[%s5 + $0x288] sm:$0xff]
    %v242 = vld [vmem:[%s5 + $0x290] sm:$0xff]
    %v243 = vld [vmem:[%s5 + $0x298] sm:$0xff]
    %v244 = vld [vmem:[%s5 + $0x2a0] sm:$0xff]
    %v245 = vld [vmem:[%s5 + $0x2a8] sm:$0xff]
    %v246 = vld [vmem:[%s5 + $0x2b0] sm:$0xff]
    %v247 = vld [vmem:[%s5 + $0x2b8] sm:$0xff]
    %v248 = vld [vmem:[%s5 + $0x2c0] sm:$0xff]
    %v249 = vld [vmem:[%s5 + $0x2c8] sm:$0xff]
    %v250 = vld [vmem:[%s5 + $0x2d0] sm:$0xff]
    %v251 = vld [vmem:[%s5 + $0x2d8] sm:$0xff]
    %v252 = vld [vmem:[%s5 + $0x2e0] sm:$0xff]
    %v253 = vld [vmem:[%s5 + $0x2e8] sm:$0xff]
    %v254 = vld [vmem:[%s5 + $0x2f0] sm:$0xff]
    %v255 = vld [vmem:[%s5 + $0x2f8] sm:$0xff]
    %v256 = vld [vmem:[%s6] sm:$0x7]
    %v258 = vperm.slane %v256, 0
    %v259 = vperm.slane %v256, 1
    %v260 = vperm.slane %v256, 2
    %264 = vmatpush.msra.mxu0 %v205
    %265 = vmatpush.msra.mxu0 %v202
    %266 = vmatpush.msra.mxu0 %v199
    %267 = vmatpush.msra.mxu0 %v196
    %268 = vmatpush.msra.mxu0 %v193
    %269 = vmatpush.msra.mxu0 %v190
    %270 = vmatpush.msra.mxu0 %v187
    %271 = vmatpush.msra.mxu0 %v184
    %272 = vmatpush.msra.mxu0 %v181
    %273 = vmatpush.msra.mxu0 %v178
    %274 = vmatpush.msra.mxu0 %v175
    %275 = vmatpush.msra.mxu0 %v172
    %276 = vmatpush.msra.mxu0 %v169
    %277 = vmatpush.msra.mxu0 %v166
    %278 = vmatpush.msra.mxu0 %v163
    %279 = vmatpush.msra.mxu0 %v160
    %280 = vmatmul.f32.gmra.mxu0 %v158
    %v281 = vpop.f32.mrf.mxu0
    %v282 = vadd.f32 %v258, %v281
    %283 = vdwg.mxu0
    %284 = vmatpush.msra.mxu0 %v253
    %285 = vmatpush.msra.mxu0 %v250
    %286 = vmatpush.msra.mxu0 %v247
    %287 = vmatpush.msra.mxu0 %v244
    %288 = vmatpush.msra.mxu0 %v241
    %289 = vmatpush.msra.mxu0 %v238
    %290 = vmatpush.msra.mxu0 %v235
    %291 = vmatpush.msra.mxu0 %v232
    %292 = vmatpush.msra.mxu0 %v229
    %293 = vmatpush.msra.mxu0 %v226
    %294 = vmatpush.msra.mxu0 %v223
    %295 = vmatpush.msra.mxu0 %v220
    %296 = vmatpush.msra.mxu0 %v217
    %297 = vmatpush.msra.mxu0 %v214
    %298 = vmatpush.msra.mxu0 %v211
    %299 = vmatpush.msra.mxu0 %v208
    %300 = vmatmul.f32.gmra.mxu0 %v159
    %v301 = vpop.f32.mrf.mxu0
    %v302 = vadd.f32 %v282, %v301
    %303 = vdwg.mxu0
    %304 = vmatpush.msra.mxu0 %v206
    %305 = vmatpush.msra.mxu0 %v203
    %306 = vmatpush.msra.mxu0 %v200
    %307 = vmatpush.msra.mxu0 %v197
    %308 = vmatpush.msra.mxu0 %v194
    %309 = vmatpush.msra.mxu0 %v191
    %310 = vmatpush.msra.mxu0 %v188
    %311 = vmatpush.msra.mxu0 %v185
    %312 = vmatpush.msra.mxu0 %v182
    %313 = vmatpush.msra.mxu0 %v179
    %314 = vmatpush.msra.mxu0 %v176
    %315 = vmatpush.msra.mxu0 %v173
    %316 = vmatpush.msra.mxu0 %v170
    %317 = vmatpush.msra.mxu0 %v167
    %318 = vmatpush.msra.mxu0 %v164
    %319 = vmatpush.msra.mxu0 %v161
    %320 = vmatmul.f32.gmra.mxu0 %v158
    %v321 = vpop.f32.mrf.mxu0
    %v322 = vadd.f32 %v259, %v321
    %323 = vdwg.mxu0
    %324 = vmatpush.msra.mxu0 %v254
    %325 = vmatpush.msra.mxu0 %v251
    %326 = vmatpush.msra.mxu0 %v248
    %327 = vmatpush.msra.mxu0 %v245
    %328 = vmatpush.msra.mxu0 %v242
    %329 = vmatpush.msra.mxu0 %v239
    %330 = vmatpush.msra.mxu0 %v236
    %331 = vmatpush.msra.mxu0 %v233
    %332 = vmatpush.msra.mxu0 %v230
    %333 = vmatpush.msra.mxu0 %v227
    %334 = vmatpush.msra.mxu0 %v224
    %335 = vmatpush.msra.mxu0 %v221
    %336 = vmatpush.msra.mxu0 %v218
    %337 = vmatpush.msra.mxu0 %v215
    %338 = vmatpush.msra.mxu0 %v212
    %339 = vmatpush.msra.mxu0 %v209
    %340 = vmatmul.f32.gmra.mxu0 %v159
    %v341 = vpop.f32.mrf.mxu0
    %v342 = vadd.f32 %v322, %v341
    %343 = vdwg.mxu0
    %344 = vmatpush.msra.mxu0 %v207
    %345 = vmatpush.msra.mxu0 %v204
    %346 = vmatpush.msra.mxu0 %v201
    %347 = vmatpush.msra.mxu0 %v198
    %348 = vmatpush.msra.mxu0 %v195
    %349 = vmatpush.msra.mxu0 %v192
    %350 = vmatpush.msra.mxu0 %v189
    %351 = vmatpush.msra.mxu0 %v186
    %352 = vmatpush.msra.mxu0 %v183
    %353 = vmatpush.msra.mxu0 %v180
    %354 = vmatpush.msra.mxu0 %v177
    %355 = vmatpush.msra.mxu0 %v174
    %356 = vmatpush.msra.mxu0 %v171
    %357 = vmatpush.msra.mxu0 %v168
    %358 = vmatpush.msra.mxu0 %v165
    %359 = vmatpush.msra.mxu0 %v162
    %360 = vmatmul.f32.gmra.mxu0 %v158
    %v361 = vpop.f32.mrf.mxu0
    %v362 = vadd.f32 %v260, %v361
    %363 = vdwg.mxu0
    %364 = vmatpush.msra.mxu0 %v255
    %365 = vmatpush.msra.mxu0 %v252
    %366 = vmatpush.msra.mxu0 %v249
    %367 = vmatpush.msra.mxu0 %v246
    %368 = vmatpush.msra.mxu0 %v243
    %369 = vmatpush.msra.mxu0 %v240
    %370 = vmatpush.msra.mxu0 %v237
    %371 = vmatpush.msra.mxu0 %v234
    %372 = vmatpush.msra.mxu0 %v231
    %373 = vmatpush.msra.mxu0 %v228
    %374 = vmatpush.msra.mxu0 %v225
    %375 = vmatpush.msra.mxu0 %v222
    %376 = vmatpush.msra.mxu0 %v219
    %377 = vmatpush.msra.mxu0 %v216
    %378 = vmatpush.msra.mxu0 %v213
    %379 = vmatpush.msra.mxu0 %v210
    %380 = vmatmul.f32.gmra.mxu0 %v159
    %v381 = vpop.f32.mrf.mxu0
    %v382 = vadd.f32 %v362, %v381
    %383 = vdwg.mxu0
    %v384 = vld [vmem:[%s7] sm:$0xff]
    %v385 = vld [vmem:[%s7 + $0x8] sm:$0xff]
    %v386 = vld [vmem:[%s7 + $0x10] sm:$0xff]
    %v387 = vld [vmem:[%s7 + $0x18] sm:$0xff]
    %v388 = vld [vmem:[%s7 + $0x20] sm:$0xff]
    %v389 = vld [vmem:[%s7 + $0x28] sm:$0xff]
    %v390 = vld [vmem:[%s7 + $0x30] sm:$0xff]
    %v391 = vld [vmem:[%s7 + $0x38] sm:$0xff]
    %v392 = vld [vmem:[%s7 + $0x40] sm:$0xff]
    %v393 = vld [vmem:[%s7 + $0x48] sm:$0xff]
    %v394 = vld [vmem:[%s7 + $0x50] sm:$0xff]
    %v395 = vld [vmem:[%s7 + $0x58] sm:$0xff]
    %v396 = vld [vmem:[%s7 + $0x60] sm:$0xff]
    %v397 = vld [vmem:[%s7 + $0x68] sm:$0xff]
    %v398 = vld [vmem:[%s7 + $0x70] sm:$0xff]
    %v399 = vld [vmem:[%s7 + $0x78] sm:$0xff]
    %v400 = vld [vmem:[%s7 + $0x80] sm:$0xff]
    %v401 = vld [vmem:[%s7 + $0x88] sm:$0xff]
    %v402 = vld [vmem:[%s7 + $0x90] sm:$0xff]
    %v403 = vld [vmem:[%s7 + $0x98] sm:$0xff]
    %v404 = vld [vmem:[%s7 + $0xa0] sm:$0xff]
    %v405 = vld [vmem:[%s7 + $0xa8] sm:$0xff]
    %v406 = vld [vmem:[%s7 + $0xb0] sm:$0xff]
    %v407 = vld [vmem:[%s7 + $0xb8] sm:$0xff]
    %v408 = vld [vmem:[%s7 + $0xc0] sm:$0xff]
    %v409 = vld [vmem:[%s7 + $0xc8] sm:$0xff]
    %v410 = vld [vmem:[%s7 + $0xd0] sm:$0xff]
    %v411 = vld [vmem:[%s7 + $0xd8] sm:$0xff]
    %v412 = vld [vmem:[%s7 + $0xe0] sm:$0xff]
    %v413 = vld [vmem:[%s7 + $0xe8] sm:$0xff]
    %v414 = vld [vmem:[%s7 + $0xf0] sm:$0xff]
    %v415 = vld [vmem:[%s7 + $0xf8] sm:$0xff]
    %v416 = vld [vmem:[%s7 + $0x100] sm:$0xff]
    %v417 = vld [vmem:[%s7 + $0x108] sm:$0xff]
    %v418 = vld [vmem:[%s7 + $0x110] sm:$0xff]
    %v419 = vld [vmem:[%s7 + $0x118] sm:$0xff]
    %v420 = vld [vmem:[%s7 + $0x120] sm:$0xff]
    %v421 = vld [vmem:[%s7 + $0x128] sm:$0xff]
    %v422 = vld [vmem:[%s7 + $0x130] sm:$0xff]
    %v423 = vld [vmem:[%s7 + $0x138] sm:$0xff]
    %v424 = vld [vmem:[%s7 + $0x140] sm:$0xff]
    %v425 = vld [vmem:[%s7 + $0x148] sm:$0xff]
    %v426 = vld [vmem:[%s7 + $0x150] sm:$0xff]
    %v427 = vld [vmem:[%s7 + $0x158] sm:$0xff]
    %v428 = vld [vmem:[%s7 + $0x160] sm:$0xff]
    %v429 = vld [vmem:[%s7 + $0x168] sm:$0xff]
    %v430 = vld [vmem:[%s7 + $0x170] sm:$0xff]
    %v431 = vld [vmem:[%s7 + $0x178] sm:$0xff]
    %v432 = vld [vmem:[%s7 + $0x180] sm:$0xff]
    %v433 = vld [vmem:[%s7 + $0x188] sm:$0xff]
    %v434 = vld [vmem:[%s7 + $0x190] sm:$0xff]
    %v435 = vld [vmem:[%s7 + $0x198] sm:$0xff]
    %v436 = vld [vmem:[%s7 + $0x1a0] sm:$0xff]
    %v437 = vld [vmem:[%s7 + $0x1a8] sm:$0xff]
    %v438 = vld [vmem:[%s7 + $0x1b0] sm:$0xff]
    %v439 = vld [vmem:[%s7 + $0x1b8] sm:$0xff]
    %v440 = vld [vmem:[%s7 + $0x1c0] sm:$0xff]
    %v441 = vld [vmem:[%s7 + $0x1c8] sm:$0xff]
    %v442 = vld [vmem:[%s7 + $0x1d0] sm:$0xff]
    %v443 = vld [vmem:[%s7 + $0x1d8] sm:$0xff]
    %v444 = vld [vmem:[%s7 + $0x1e0] sm:$0xff]
    %v445 = vld [vmem:[%s7 + $0x1e8] sm:$0xff]
    %v446 = vld [vmem:[%s7 + $0x1f0] sm:$0xff]
    %v447 = vld [vmem:[%s7 + $0x1f8] sm:$0xff]
    %v448 = vld [vmem:[%s7 + $0x200] sm:$0xff]
    %v449 = vld [vmem:[%s7 + $0x208] sm:$0xff]
    %v450 = vld [vmem:[%s7 + $0x210] sm:$0xff]
    %v451 = vld [vmem:[%s7 + $0x218] sm:$0xff]
    %v452 = vld [vmem:[%s7 + $0x220] sm:$0xff]
    %v453 = vld [vmem:[%s7 + $0x228] sm:$0xff]
    %v454 = vld [vmem:[%s7 + $0x230] sm:$0xff]
    %v455 = vld [vmem:[%s7 + $0x238] sm:$0xff]
    %v456 = vld [vmem:[%s7 + $0x240] sm:$0xff]
    %v457 = vld [vmem:[%s7 + $0x248] sm:$0xff]
    %v458 = vld [vmem:[%s7 + $0x250] sm:$0xff]
    %v459 = vld [vmem:[%s7 + $0x258] sm:$0xff]
    %v460 = vld [vmem:[%s7 + $0x260] sm:$0xff]
    %v461 = vld [vmem:[%s7 + $0x268] sm:$0xff]
    %v462 = vld [vmem:[%s7 + $0x270] sm:$0xff]
    %v463 = vld [vmem:[%s7 + $0x278] sm:$0xff]
    %v464 = vld [vmem:[%s7 + $0x280] sm:$0xff]
    %v465 = vld [vmem:[%s7 + $0x288] sm:$0xff]
    %v466 = vld [vmem:[%s7 + $0x290] sm:$0xff]
    %v467 = vld [vmem:[%s7 + $0x298] sm:$0xff]
    %v468 = vld [vmem:[%s7 + $0x2a0] sm:$0xff]
    %v469 = vld [vmem:[%s7 + $0x2a8] sm:$0xff]
    %v470 = vld [vmem:[%s7 + $0x2b0] sm:$0xff]
    %v471 = vld [vmem:[%s7 + $0x2b8] sm:$0xff]
    %v472 = vld [vmem:[%s7 + $0x2c0] sm:$0xff]
    %v473 = vld [vmem:[%s7 + $0x2c8] sm:$0xff]
    %v474 = vld [vmem:[%s7 + $0x2d0] sm:$0xff]
    %v475 = vld [vmem:[%s7 + $0x2d8] sm:$0xff]
    %v476 = vld [vmem:[%s7 + $0x2e0] sm:$0xff]
    %v477 = vld [vmem:[%s7 + $0x2e8] sm:$0xff]
    %v478 = vld [vmem:[%s7 + $0x2f0] sm:$0xff]
    %v479 = vld [vmem:[%s7 + $0x2f8] sm:$0xff]
    %v480 = vld [vmem:[%s8] sm:$0x3]
    %v482 = vperm.slane %v480, 0
    %v483 = vperm.slane %v480, 1
    %486 = vmatpush.msra.mxu0 %v414
    %487 = vmatpush.msra.mxu0 %v412
    %488 = vmatpush.msra.mxu0 %v410
    %489 = vmatpush.msra.mxu0 %v408
    %490 = vmatpush.msra.mxu0 %v406
    %491 = vmatpush.msra.mxu0 %v404
    %492 = vmatpush.msra.mxu0 %v402
    %493 = vmatpush.msra.mxu0 %v400
    %494 = vmatpush.msra.mxu0 %v398
    %495 = vmatpush.msra.mxu0 %v396
    %496 = vmatpush.msra.mxu0 %v394
    %497 = vmatpush.msra.mxu0 %v392
    %498 = vmatpush.msra.mxu0 %v390
    %499 = vmatpush.msra.mxu0 %v388
    %500 = vmatpush.msra.mxu0 %v386
    %501 = vmatpush.msra.mxu0 %v384
    %502 = vmatmul.f32.gmra.mxu0 %v302
    %v503 = vpop.f32.mrf.mxu0
    %v504 = vadd.f32 %v482, %v503
    %505 = vdwg.mxu0
    %506 = vmatpush.msra.mxu0 %v446
    %507 = vmatpush.msra.mxu0 %v444
    %508 = vmatpush.msra.mxu0 %v442
    %509 = vmatpush.msra.mxu0 %v440
    %510 = vmatpush.msra.mxu0 %v438
    %511 = vmatpush.msra.mxu0 %v436
    %512 = vmatpush.msra.mxu0 %v434
    %513 = vmatpush.msra.mxu0 %v432
    %514 = vmatpush.msra.mxu0 %v430
    %515 = vmatpush.msra.mxu0 %v428
    %516 = vmatpush.msra.mxu0 %v426
    %517 = vmatpush.msra.mxu0 %v424
    %518 = vmatpush.msra.mxu0 %v422
    %519 = vmatpush.msra.mxu0 %v420
    %520 = vmatpush.msra.mxu0 %v418
    %521 = vmatpush.msra.mxu0 %v416
    %522 = vmatmul.f32.gmra.mxu0 %v342
    %v523 = vpop.f32.mrf.mxu0
    %v524 = vadd.f32 %v504, %v523
    %525 = vdwg.mxu0
    %526 = vmatpush.msra.mxu0 %v478
    %527 = vmatpush.msra.mxu0 %v476
    %528 = vmatpush.msra.mxu0 %v474
    %529 = vmatpush.msra.mxu0 %v472
    %530 = vmatpush.msra.mxu0 %v470
    %531 = vmatpush.msra.mxu0 %v468
    %532 = vmatpush.msra.mxu0 %v466
    %533 = vmatpush.msra.mxu0 %v464
    %534 = vmatpush.msra.mxu0 %v462
    %535 = vmatpush.msra.mxu0 %v460
    %536 = vmatpush.msra.mxu0 %v458
    %537 = vmatpush.msra.mxu0 %v456
    %538 = vmatpush.msra.mxu0 %v454
    %539 = vmatpush.msra.mxu0 %v452
    %540 = vmatpush.msra.mxu0 %v450
    %541 = vmatpush.msra.mxu0 %v448
    %542 = vmatmul.f32.gmra.mxu0 %v382
    %v543 = vpop.f32.mrf.mxu0
    %v544 = vadd.f32 %v524, %v543
    %545 = vdwg.mxu0
    %546 = vmatpush.msra.mxu0 %v415
    %547 = vmatpush.msra.mxu0 %v413
    %548 = vmatpush.msra.mxu0 %v411
    %549 = vmatpush.msra.mxu0 %v409
    %550 = vmatpush.msra.mxu0 %v407
    %551 = vmatpush.msra.mxu0 %v405
    %552 = vmatpush.msra.mxu0 %v403
    %553 = vmatpush.msra.mxu0 %v401
    %554 = vmatpush.msra.mxu0 %v399
    %555 = vmatpush.msra.mxu0 %v397
    %556 = vmatpush.msra.mxu0 %v395
    %557 = vmatpush.msra.mxu0 %v393
    %558 = vmatpush.msra.mxu0 %v391
    %559 = vmatpush.msra.mxu0 %v389
    %560 = vmatpush.msra.mxu0 %v387
    %561 = vmatpush.msra.mxu0 %v385
    %562 = vmatmul.f32.gmra.mxu0 %v302
    %v563 = vpop.f32.mrf.mxu0
    %v564 = vadd.f32 %v483, %v563
    %565 = vdwg.mxu0
    %566 = vmatpush.msra.mxu0 %v447
    %567 = vmatpush.msra.mxu0 %v445
    %568 = vmatpush.msra.mxu0 %v443
    %569 = vmatpush.msra.mxu0 %v441
    %570 = vmatpush.msra.mxu0 %v439
    %571 = vmatpush.msra.mxu0 %v437
    %572 = vmatpush.msra.mxu0 %v435
    %573 = vmatpush.msra.mxu0 %v433
    %574 = vmatpush.msra.mxu0 %v431
    %575 = vmatpush.msra.mxu0 %v429
    %576 = vmatpush.msra.mxu0 %v427
    %577 = vmatpush.msra.mxu0 %v425
    %578 = vmatpush.msra.mxu0 %v423
    %579 = vmatpush.msra.mxu0 %v421
    %580 = vmatpush.msra.mxu0 %v419
    %581 = vmatpush.msra.mxu0 %v417
    %582 = vmatmul.f32.gmra.mxu0 %v342
    %v583 = vpop.f32.mrf.mxu0
    %v584 = vadd.f32 %v564, %v583
    %585 = vdwg.mxu0
    %586 = vmatpush.msra.mxu0 %v479
    %587 = vmatpush.msra.mxu0 %v477
    %588 = vmatpush.msra.mxu0 %v475
    %589 = vmatpush.msra.mxu0 %v473
    %590 = vmatpush.msra.mxu0 %v471
    %591 = vmatpush.msra.mxu0 %v469
    %592 = vmatpush.msra.mxu0 %v467
    %593 = vmatpush.msra.mxu0 %v465
    %594 = vmatpush.msra.mxu0 %v463
    %595 = vmatpush.msra.mxu0 %v461
    %596 = vmatpush.msra.mxu0 %v459
    %597 = vmatpush.msra.mxu0 %v457
    %598 = vmatpush.msra.mxu0 %v455
    %599 = vmatpush.msra.mxu0 %v453
    %600 = vmatpush.msra.mxu0 %v451
    %601 = vmatpush.msra.mxu0 %v449
    %602 = vmatmul.f32.gmra.mxu0 %v382
    %v603 = vpop.f32.mrf.mxu0
    %v604 = vadd.f32 %v584, %v603
    %605 = vdwg.mxu0
    %v606 = vmul.f32 %v544, 0.1
    %v607 = vmul.f32 %v604, 0.1
    %v608 = vmax.f32 %v544, %v606
    %v609 = vmax.f32 %v604, %v607
    %v610 = vld [vmem:[%s9] sm:$0xff]
    %v611 = vld [vmem:[%s9 + $0x8] sm:$0xff]
    %v612 = vld [vmem:[%s9 + $0x10] sm:$0xff]
    %v613 = vld [vmem:[%s9 + $0x18] sm:$0xff]
    %v614 = vld [vmem:[%s9 + $0x20] sm:$0xff]
    %v615 = vld [vmem:[%s9 + $0x28] sm:$0xff]
    %v616 = vld [vmem:[%s9 + $0x30] sm:$0xff]
    %v617 = vld [vmem:[%s9 + $0x38] sm:$0xff]
    %v618 = vld [vmem:[%s9 + $0x40] sm:$0xff]
    %v619 = vld [vmem:[%s9 + $0x48] sm:$0xff]
    %v620 = vld [vmem:[%s9 + $0x50] sm:$0xff]
    %v621 = vld [vmem:[%s9 + $0x58] sm:$0xff]
    %v622 = vld [vmem:[%s9 + $0x60] sm:$0xff]
    %v623 = vld [vmem:[%s9 + $0x68] sm:$0xff]
    %v624 = vld [vmem:[%s9 + $0x70] sm:$0xff]
    %v625 = vld [vmem:[%s9 + $0x78] sm:$0xff]
    %v626 = vld [vmem:[%s9 + $0x80] sm:$0xff]
    %v627 = vld [vmem:[%s9 + $0x88] sm:$0xff]
    %v628 = vld [vmem:[%s9 + $0x90] sm:$0xff]
    %v629 = vld [vmem:[%s9 + $0x98] sm:$0xff]
    %v630 = vld [vmem:[%s9 + $0xa0] sm:$0xff]
    %v631 = vld [vmem:[%s9 + $0xa8] sm:$0xff]
    %v632 = vld [vmem:[%s9 + $0xb0] sm:$0xff]
    %v633 = vld [vmem:[%s9 + $0xb8] sm:$0xff]
    %v634 = vld [vmem:[%s9 + $0xc0] sm:$0xff]
    %v635 = vld [vmem:[%s9 + $0xc8] sm:$0xff]
    %v636 = vld [vmem:[%s9 + $0xd0] sm:$0xff]
    %v637 = vld [vmem:[%s9 + $0xd8] sm:$0xff]
    %v638 = vld [vmem:[%s9 + $0xe0] sm:$0xff]
    %v639 = vld [vmem:[%s9 + $0xe8] sm:$0xff]
    %v640 = vld [vmem:[%s9 + $0xf0] sm:$0xff]
    %v641 = vld [vmem:[%s9 + $0xf8] sm:$0xff]
    %v642 = vld [vmem:[%s10] sm:$0x1]
    %v644 = vperm.slane %v642, 0
    %646 = vmatpush.msra.mxu0 %v625
    %647 = vmatpush.msra.mxu0 %v624
    %648 = vmatpush.msra.mxu0 %v623
    %649 = vmatpush.msra.mxu0 %v622
    %650 = vmatpush.msra.mxu0 %v621
    %651 = vmatpush.msra.mxu0 %v620
    %652 = vmatpush.msra.mxu0 %v619
    %653 = vmatpush.msra.mxu0 %v618
    %654 = vmatpush.msra.mxu0 %v617
    %655 = vmatpush.msra.mxu0 %v616
    %656 = vmatpush.msra.mxu0 %v615
    %657 = vmatpush.msra.mxu0 %v614
    %658 = vmatpush.msra.mxu0 %v613
    %659 = vmatpush.msra.mxu0 %v612
    %660 = vmatpush.msra.mxu0 %v611
    %661 = vmatpush.msra.mxu0 %v610
    %662 = vmatmul.f32.gmra.mxu0 %v608
    %v663 = vpop.f32.mrf.mxu0
    %v664 = vadd.f32 %v644, %v663
    %665 = vdwg.mxu0
    %666 = vmatpush.msra.mxu0 %v641
    %667 = vmatpush.msra.mxu0 %v640
    %668 = vmatpush.msra.mxu0 %v639
    %669 = vmatpush.msra.mxu0 %v638
    %670 = vmatpush.msra.mxu0 %v637
    %671 = vmatpush.msra.mxu0 %v636
    %672 = vmatpush.msra.mxu0 %v635
    %673 = vmatpush.msra.mxu0 %v634
    %674 = vmatpush.msra.mxu0 %v633
    %675 = vmatpush.msra.mxu0 %v632
    %676 = vmatpush.msra.mxu0 %v631
    %677 = vmatpush.msra.mxu0 %v630
    %678 = vmatpush.msra.mxu0 %v629
    %679 = vmatpush.msra.mxu0 %v628
    %680 = vmatpush.msra.mxu0 %v627
    %681 = vmatpush.msra.mxu0 %v626
    %682 = vmatmul.f32.gmra.mxu0 %v609
    %v683 = vpop.f32.mrf.mxu0
    %v684 = vadd.f32 %v664, %v683
    %685 = vdwg.mxu0
    %686 = vst [vmem:[#allocation2] sm:$0xff] %v684
    %v687 = vand.u32 2147483647, %v302
    %v688 = vand.u32 2147483647, %v342
    %v689 = vand.u32 2147483647, %v382
    %v690 = vrot.slane %v687, 4
    %v691 = vadd.f32 %v687, %v690
    %v692 = vrot.slane %v691, 2
    %v693 = vadd.f32 %v691, %v692
    %v694 = vrot.slane %v693, 1
    %v695 = vadd.f32 %v693, %v694
    %v696 = vrot.slane %v688, 4
    %v697 = vadd.f32 %v688, %v696
    %v698 = vrot.slane %v697, 2
    %v699 = vadd.f32 %v697, %v698
    %v700 = vrot.slane %v699, 1
    %v701 = vadd.f32 %v699, %v700
    %v702 = vrot.slane %v689, 4
    %v703 = vadd.f32 %v689, %v702
    %v704 = vrot.slane %v703, 2
    %v705 = vadd.f32 %v703, %v704
    %v706 = vrot.slane %v705, 1
    %v707 = vadd.f32 %v705, %v706
    %v711 = vrot.slane %v701, 7
    %v712 = vrot.slane %v707, 6
    %vm713 = vcmask 1040384
    %v714 = vsel %vm713, %v695, %v711
    %vm715 = vcmask 1041408
    %v716 = vsel %vm715, %v714, %v712
    %v718 = vlaneseq
    %vm719 = vcmp.ge.s32.totalorder %v718, 0
    %vm720 = vcmp.lt.s32.totalorder %v718, 384
    %vm721 = vmand %vm719, %vm720
    %722 = vst.msk [vmem:[%s12] sm:$0x7] %vm721, %v716
    // Predicated region
    $region46: #{robust_sparse_autoencoder_forward.1} parent=1 // pred_check
      _
    $region47: #{robust_sparse_autoencoder_forward.1} parent=1 // pred_check_branch
      %724 = sbr.rel (0) target = $region49
    $region48: #{robust_sparse_autoencoder_forward.1} parent=1 // pred_region
      %726 = vsyncadd [#allocation3], 0
      %s728 = sshll.u32 [#allocation2], 4
      %s729 = int_to_ptr.vmem [resolvable:$true] %s728
      %s730 = sshll.u32 %s11, 4
      %s731 = int_to_ptr.hbm [resolvable:$true] %s730
      %733 = dma.vmem_to_hbm [thread:$0]  %s729, 128, %s731, [#allocation3]
    $region49: #{robust_sparse_autoencoder_forward.1} parent=1 // pred_fallthru
      _
    // Predicated region
    $region50: #{robust_sparse_autoencoder_forward.1} parent=1 // pred_check
      _
    $region51: #{robust_sparse_autoencoder_forward.1} parent=1 // pred_check_branch
      %735 = sbr.rel (0) target = $region53
    $region52: #{robust_sparse_autoencoder_forward.1} parent=1 // pred_region
      _
    $region53: #{robust_sparse_autoencoder_forward.1} parent=1 // pred_fallthru
      _
    // Predicated region
    $region54: #{robust_sparse_autoencoder_forward.1} parent=1 // pred_check
      _
    $region55: #{robust_sparse_autoencoder_forward.1} parent=1 // pred_check_branch
      %737 = sbr.rel (0) target = $region57
    $region56: #{robust_sparse_autoencoder_forward.1} parent=1 // pred_region
      %739 = dma.done [#allocation3], 128
    $region57: #{robust_sparse_autoencoder_forward.1} parent=1 // pred_fallthru
      _
    // Predicated region
    $region58: #{robust_sparse_autoencoder_forward.1} parent=1 // pred_check
      _
    $region59: #{robust_sparse_autoencoder_forward.1} parent=1 // pred_check_branch
      %741 = sbr.rel (0) target = $region61
    $region60: #{robust_sparse_autoencoder_forward.1} parent=1 // pred_region
      _
    $region61: #{robust_sparse_autoencoder_forward.1} parent=1 // pred_fallthru
      _
    %742 = vsyncpa [#allocation3], 1

// kernel: robust_sparse_autoencoder_forward.1
$region0: #{robust_sparse_autoencoder_forward.1}
  #allocation0 [shape = 'u32[]', space=smem, size = 0x4, offset = 0x4, fixed_abs, tag = 'smem constant byte address 0x4 - core index']
  #allocation1 [shape = 'u32[72,128]{1,0:T(1,128)}', space=vmem, size = 0x9000, scoped, tag = 'internal scratch']
  %s0 = inlined_call_operand.vmem [shape: f32[8,128], index: 0, kind: input, shape index: {}]
  %s1 = inlined_call_operand.vmem [shape: f32[1,128], index: 1, kind: input, shape index: {}]
  %s2 = inlined_call_operand.vmem [shape: f32[1,128], index: 2, kind: input, shape index: {}]
  %s3 = inlined_call_operand.vmem [shape: f32[128,256], index: 3, kind: input, shape index: {}]
  %s4 = inlined_call_operand.vmem [shape: f32[1,256], index: 4, kind: input, shape index: {}]
  %s5 = inlined_call_operand.vmem [shape: f32[256,384], index: 5, kind: input, shape index: {}]
  %s6 = inlined_call_operand.vmem [shape: f32[1,384], index: 6, kind: input, shape index: {}]
  %s7 = inlined_call_operand.vmem [shape: f32[384,256], index: 7, kind: input, shape index: {}]
  %s8 = inlined_call_operand.vmem [shape: f32[1,256], index: 8, kind: input, shape index: {}]
  %s9 = inlined_call_operand.vmem [shape: f32[256,128], index: 9, kind: input, shape index: {}]
  %s10 = inlined_call_operand.vmem [shape: f32[1,128], index: 10, kind: input, shape index: {}]
  %s11 = inlined_call_operand.hbm [shape: f32[8,128], index: 11, kind: output, shape index: {0}]
  %s12 = inlined_call_operand.vmem [shape: f32[1,1,384], index: 12, kind: output, shape index: {1}]
  %13 = xla_tuple %s11, %s12
  %s14 = sld [smem:[#allocation0]]
  $region62: #{robust_sparse_autoencoder_forward.1} parent=0
    _
  %s16 = ssub.s32 1, %s14
  %s17 = scalar_select 0, %s16, %s14
  $region1: #{robust_sparse_autoencoder_forward.1} parent=0
    #allocation2 [shape = 'u8[4096]{0}', space=vmem, size = 0x1000, scoped, tag = 'output window, operand 0, single buffered']
    #allocation3 [shape = 's32[1]{0}', space=sflag, size = 0x4, scoped, tag = 'scoped memory for robust_sparse_autoencoder_forward.1']
    %18 = vsyncpa [#allocation3], 0
    // Predicated region
    $region2: #{robust_sparse_autoencoder_forward.1} parent=1 // pred_check
      _
    $region3: #{robust_sparse_autoencoder_forward.1} parent=1 // pred_check_branch
      %20 = sbr.rel (0) target = $region5
    $region4: #{robust_sparse_autoencoder_forward.1} parent=1 // pred_region
      _
    $region5: #{robust_sparse_autoencoder_forward.1} parent=1 // pred_fallthru
      _
    // Predicated region
    $region6: #{robust_sparse_autoencoder_forward.1} parent=1 // pred_check
      _
    $region7: #{robust_sparse_autoencoder_forward.1} parent=1 // pred_check_branch
      %22 = sbr.rel (0) target = $region9
    $region8: #{robust_sparse_autoencoder_forward.1} parent=1 // pred_region
      _
    $region9: #{robust_sparse_autoencoder_forward.1} parent=1 // pred_fallthru
      _
    // Predicated region
    $region10: #{robust_sparse_autoencoder_forward.1} parent=1 // pred_check
      _
    $region11: #{robust_sparse_autoencoder_forward.1} parent=1 // pred_check_branch
      %24 = sbr.rel (0) target = $region13
    $region12: #{robust_sparse_autoencoder_forward.1} parent=1 // pred_region
      _
    $region13: #{robust_sparse_autoencoder_forward.1} parent=1 // pred_fallthru
      _
    // Predicated region
    $region14: #{robust_sparse_autoencoder_forward.1} parent=1 // pred_check
      _
    $region15: #{robust_sparse_autoencoder_forward.1} parent=1 // pred_check_branch
      %26 = sbr.rel (0) target = $region17
    $region16: #{robust_sparse_autoencoder_forward.1} parent=1 // pred_region
      _
    $region17: #{robust_sparse_autoencoder_forward.1} parent=1 // pred_fallthru
      _
    // Predicated region
    $region18: #{robust_sparse_autoencoder_forward.1} parent=1 // pred_check
      _
    $region19: #{robust_sparse_autoencoder_forward.1} parent=1 // pred_check_branch
      %28 = sbr.rel (0) target = $region21
    $region20: #{robust_sparse_autoencoder_forward.1} parent=1 // pred_region
      _
    $region21: #{robust_sparse_autoencoder_forward.1} parent=1 // pred_fallthru
      _
    // Predicated region
    $region22: #{robust_sparse_autoencoder_forward.1} parent=1 // pred_check
      _
    $region23: #{robust_sparse_autoencoder_forward.1} parent=1 // pred_check_branch
      %30 = sbr.rel (0) target = $region25
    $region24: #{robust_sparse_autoencoder_forward.1} parent=1 // pred_region
      _
    $region25: #{robust_sparse_autoencoder_forward.1} parent=1 // pred_fallthru
      _
    // Predicated region
    $region26: #{robust_sparse_autoencoder_forward.1} parent=1 // pred_check
      _
    $region27: #{robust_sparse_autoencoder_forward.1} parent=1 // pred_check_branch
      %32 = sbr.rel (0) target = $region29
    $region28: #{robust_sparse_autoencoder_forward.1} parent=1 // pred_region
      _
    $region29: #{robust_sparse_autoencoder_forward.1} parent=1 // pred_fallthru
      _
    // Predicated region
    $region30: #{robust_sparse_autoencoder_forward.1} parent=1 // pred_check
      _
    $region31: #{robust_sparse_autoencoder_forward.1} parent=1 // pred_check_branch
      %34 = sbr.rel (0) target = $region33
    $region32: #{robust_sparse_autoencoder_forward.1} parent=1 // pred_region
      _
    $region33: #{robust_sparse_autoencoder_forward.1} parent=1 // pred_fallthru
      _
    // Predicated region
    $region34: #{robust_sparse_autoencoder_forward.1} parent=1 // pred_check
      _
    $region35: #{robust_sparse_autoencoder_forward.1} parent=1 // pred_check_branch
      %36 = sbr.rel (0) target = $region37
    $region36: #{robust_sparse_autoencoder_forward.1} parent=1 // pred_region
      _
    $region37: #{robust_sparse_autoencoder_forward.1} parent=1 // pred_fallthru
      _
    // Predicated region
    $region38: #{robust_sparse_autoencoder_forward.1} parent=1 // pred_check
      _
    $region39: #{robust_sparse_autoencoder_forward.1} parent=1 // pred_check_branch
      %38 = sbr.rel (0) target = $region41
    $region40: #{robust_sparse_autoencoder_forward.1} parent=1 // pred_region
      _
    $region41: #{robust_sparse_autoencoder_forward.1} parent=1 // pred_fallthru
      _
    // Predicated region
    $region42: #{robust_sparse_autoencoder_forward.1} parent=1 // pred_check
      _
    $region43: #{robust_sparse_autoencoder_forward.1} parent=1 // pred_check_branch
      %40 = sbr.rel (0) target = $region45
    $region44: #{robust_sparse_autoencoder_forward.1} parent=1 // pred_region
      _
    $region45: #{robust_sparse_autoencoder_forward.1} parent=1 // pred_fallthru
      _
    %v41 = vld [vmem:[%s0] sm:$0xff]
    %42 = vadd.xlane.f32.xlu0 %v41
    %v43 = vpop.xlane.xlu0 %42
    %v44 = vmul.f32 %v43, 0.03125
    %v45 = vsub.f32 %v41, %v44
    %v46 = vlaneseq
    %v47 = vand.u32 %v46, 127
    %vm48 = vcmp.lt.s32.totalorder %v47, 32
    %v49 = vsel %vm48, 1, 0
    %vm50 = vcmp.eq.s32.totalorder %v49, 1
    %v51 = vsel %vm50, %v45, 0.0
    %v52 = vmul.f32 %v51, %v51
    %53 = vadd.xlane.f32.xlu0 %v52
    %v54 = vpop.xlane.xlu0 %53
    %v55 = vmul.f32 %v54, 0.03125
    %v56 = vadd.f32 %v55, 1e-05
    %v57 = vrsqrt.pop %v56
    %v58 = vmul.f32 %v57, %v56
    %v59 = vmul.f32 %v58, %v57
    %v60 = vmul.f32 0.5, %v59
    %v61 = vsub.f32 1.5, %v60
    %v62 = vmul.f32 %v57, %v61
    %vm63 = vweird.f32 %v56
    %vm64 = vweird.f32 %v57
    %vm65 = vmor %vm63, %vm64
    %v66 = vsel %vm65, %v57, %v62
    %v67 = vmul.f32 %v51, %v66
    %v68 = vld [vmem:[%s1] sm:$0x1]
    %v70 = vperm.slane %v68, 0
    %v72 = vmul.f32 %v67, %v70
    %v73 = vld [vmem:[%s2] sm:$0x1]
    %v75 = vperm.slane %v73, 0
    %v77 = vadd.f32 %v72, %v75
    %v78 = vld [vmem:[%s3] sm:$0xff]
    %v79 = vld [vmem:[%s3 + $0x8] sm:$0xff]
    %v80 = vld [vmem:[%s3 + $0x10] sm:$0xff]
    %v81 = vld [vmem:[%s3 + $0x18] sm:$0xff]
    %v82 = vld [vmem:[%s3 + $0x20] sm:$0xff]
    %v83 = vld [vmem:[%s3 + $0x28] sm:$0xff]
    %v84 = vld [vmem:[%s3 + $0x30] sm:$0xff]
    %v85 = vld [vmem:[%s3 + $0x38] sm:$0xff]
    %v86 = vld [vmem:[%s3 + $0x40] sm:$0xff]
    %v87 = vld [vmem:[%s3 + $0x48] sm:$0xff]
    %v88 = vld [vmem:[%s3 + $0x50] sm:$0xff]
    %v89 = vld [vmem:[%s3 + $0x58] sm:$0xff]
    %v90 = vld [vmem:[%s3 + $0x60] sm:$0xff]
    %v91 = vld [vmem:[%s3 + $0x68] sm:$0xff]
    %v92 = vld [vmem:[%s3 + $0x70] sm:$0xff]
    %v93 = vld [vmem:[%s3 + $0x78] sm:$0xff]
    %v94 = vld [vmem:[%s3 + $0x80] sm:$0xff]
    %v95 = vld [vmem:[%s3 + $0x88] sm:$0xff]
    %v96 = vld [vmem:[%s3 + $0x90] sm:$0xff]
    %v97 = vld [vmem:[%s3 + $0x98] sm:$0xff]
    %v98 = vld [vmem:[%s3 + $0xa0] sm:$0xff]
    %v99 = vld [vmem:[%s3 + $0xa8] sm:$0xff]
    %v100 = vld [vmem:[%s3 + $0xb0] sm:$0xff]
    %v101 = vld [vmem:[%s3 + $0xb8] sm:$0xff]
    %v102 = vld [vmem:[%s3 + $0xc0] sm:$0xff]
    %v103 = vld [vmem:[%s3 + $0xc8] sm:$0xff]
    %v104 = vld [vmem:[%s3 + $0xd0] sm:$0xff]
    %v105 = vld [vmem:[%s3 + $0xd8] sm:$0xff]
    %v106 = vld [vmem:[%s3 + $0xe0] sm:$0xff]
    %v107 = vld [vmem:[%s3 + $0xe8] sm:$0xff]
    %v108 = vld [vmem:[%s3 + $0xf0] sm:$0xff]
    %v109 = vld [vmem:[%s3 + $0xf8] sm:$0xff]
    %v110 = vld [vmem:[%s4] sm:$0x3]
    %v112 = vperm.slane %v110, 0
    %v113 = vperm.slane %v110, 1
    %116 = vmatpush.msra.mxu0 %v108
    %117 = vmatpush.msra.mxu0 %v106
    %118 = vmatpush.msra.mxu0 %v104
    %119 = vmatpush.msra.mxu0 %v102
    %120 = vmatpush.msra.mxu0 %v100
    %121 = vmatpush.msra.mxu0 %v98
    %122 = vmatpush.msra.mxu0 %v96
    %123 = vmatpush.msra.mxu0 %v94
    %124 = vmatpush.msra.mxu0 %v92
    %125 = vmatpush.msra.mxu0 %v90
    %126 = vmatpush.msra.mxu0 %v88
    %127 = vmatpush.msra.mxu0 %v86
    %128 = vmatpush.msra.mxu0 %v84
    %129 = vmatpush.msra.mxu0 %v82
    %130 = vmatpush.msra.mxu0 %v80
    %131 = vmatpush.msra.mxu0 %v78
    %132 = vmatmul.f32.gmra.mxu0 %v77
    %v133 = vpop.f32.mrf.mxu0
    %v134 = vadd.f32 %v112, %v133
    %135 = vdwg.mxu0
    %136 = vmatpush.msra.mxu0 %v109
    %137 = vmatpush.msra.mxu0 %v107
    %138 = vmatpush.msra.mxu0 %v105
    %139 = vmatpush.msra.mxu0 %v103
    %140 = vmatpush.msra.mxu0 %v101
    %141 = vmatpush.msra.mxu0 %v99
    %142 = vmatpush.msra.mxu0 %v97
    %143 = vmatpush.msra.mxu0 %v95
    %144 = vmatpush.msra.mxu0 %v93
    %145 = vmatpush.msra.mxu0 %v91
    %146 = vmatpush.msra.mxu0 %v89
    %147 = vmatpush.msra.mxu0 %v87
    %148 = vmatpush.msra.mxu0 %v85
    %149 = vmatpush.msra.mxu0 %v83
    %150 = vmatpush.msra.mxu0 %v81
    %151 = vmatpush.msra.mxu0 %v79
    %152 = vmatmul.f32.gmra.mxu0 %v77
    %v153 = vpop.f32.mrf.mxu0
    %v154 = vadd.f32 %v113, %v153
    %155 = vdwg.mxu0
    %v156 = vmul.f32 %v134, 0.1
    %v157 = vmul.f32 %v154, 0.1
    %v158 = vmax.f32 %v134, %v156
    %v159 = vmax.f32 %v154, %v157
    %v160 = vld [vmem:[%s5] sm:$0xff]
    %v161 = vld [vmem:[%s5 + $0x8] sm:$0xff]
    %v162 = vld [vmem:[%s5 + $0x10] sm:$0xff]
    %v163 = vld [vmem:[%s5 + $0x18] sm:$0xff]
    %v164 = vld [vmem:[%s5 + $0x20] sm:$0xff]
    %v165 = vld [vmem:[%s5 + $0x28] sm:$0xff]
    %v166 = vld [vmem:[%s5 + $0x30] sm:$0xff]
    %v167 = vld [vmem:[%s5 + $0x38] sm:$0xff]
    %v168 = vld [vmem:[%s5 + $0x40] sm:$0xff]
    %v169 = vld [vmem:[%s5 + $0x48] sm:$0xff]
    %v170 = vld [vmem:[%s5 + $0x50] sm:$0xff]
    %v171 = vld [vmem:[%s5 + $0x58] sm:$0xff]
    %v172 = vld [vmem:[%s5 + $0x60] sm:$0xff]
    %v173 = vld [vmem:[%s5 + $0x68] sm:$0xff]
    %v174 = vld [vmem:[%s5 + $0x70] sm:$0xff]
    %v175 = vld [vmem:[%s5 + $0x78] sm:$0xff]
    %v176 = vld [vmem:[%s5 + $0x80] sm:$0xff]
    %v177 = vld [vmem:[%s5 + $0x88] sm:$0xff]
    %v178 = vld [vmem:[%s5 + $0x90] sm:$0xff]
    %v179 = vld [vmem:[%s5 + $0x98] sm:$0xff]
    %v180 = vld [vmem:[%s5 + $0xa0] sm:$0xff]
    %v181 = vld [vmem:[%s5 + $0xa8] sm:$0xff]
    %v182 = vld [vmem:[%s5 + $0xb0] sm:$0xff]
    %v183 = vld [vmem:[%s5 + $0xb8] sm:$0xff]
    %v184 = vld [vmem:[%s5 + $0xc0] sm:$0xff]
    %v185 = vld [vmem:[%s5 + $0xc8] sm:$0xff]
    %v186 = vld [vmem:[%s5 + $0xd0] sm:$0xff]
    %v187 = vld [vmem:[%s5 + $0xd8] sm:$0xff]
    %v188 = vld [vmem:[%s5 + $0xe0] sm:$0xff]
    %v189 = vld [vmem:[%s5 + $0xe8] sm:$0xff]
    %v190 = vld [vmem:[%s5 + $0xf0] sm:$0xff]
    %v191 = vld [vmem:[%s5 + $0xf8] sm:$0xff]
    %v192 = vld [vmem:[%s5 + $0x100] sm:$0xff]
    %v193 = vld [vmem:[%s5 + $0x108] sm:$0xff]
    %v194 = vld [vmem:[%s5 + $0x110] sm:$0xff]
    %v195 = vld [vmem:[%s5 + $0x118] sm:$0xff]
    %v196 = vld [vmem:[%s5 + $0x120] sm:$0xff]
    %v197 = vld [vmem:[%s5 + $0x128] sm:$0xff]
    %v198 = vld [vmem:[%s5 + $0x130] sm:$0xff]
    %v199 = vld [vmem:[%s5 + $0x138] sm:$0xff]
    %v200 = vld [vmem:[%s5 + $0x140] sm:$0xff]
    %v201 = vld [vmem:[%s5 + $0x148] sm:$0xff]
    %v202 = vld [vmem:[%s5 + $0x150] sm:$0xff]
    %v203 = vld [vmem:[%s5 + $0x158] sm:$0xff]
    %v204 = vld [vmem:[%s5 + $0x160] sm:$0xff]
    %v205 = vld [vmem:[%s5 + $0x168] sm:$0xff]
    %v206 = vld [vmem:[%s5 + $0x170] sm:$0xff]
    %v207 = vld [vmem:[%s5 + $0x178] sm:$0xff]
    %v208 = vld [vmem:[%s5 + $0x180] sm:$0xff]
    %v209 = vld [vmem:[%s5 + $0x188] sm:$0xff]
    %v210 = vld [vmem:[%s5 + $0x190] sm:$0xff]
    %v211 = vld [vmem:[%s5 + $0x198] sm:$0xff]
    %v212 = vld [vmem:[%s5 + $0x1a0] sm:$0xff]
    %v213 = vld [vmem:[%s5 + $0x1a8] sm:$0xff]
    %v214 = vld [vmem:[%s5 + $0x1b0] sm:$0xff]
    %v215 = vld [vmem:[%s5 + $0x1b8] sm:$0xff]
    %v216 = vld [vmem:[%s5 + $0x1c0] sm:$0xff]
    %v217 = vld [vmem:[%s5 + $0x1c8] sm:$0xff]
    %v218 = vld [vmem:[%s5 + $0x1d0] sm:$0xff]
    %v219 = vld [vmem:[%s5 + $0x1d8] sm:$0xff]
    %v220 = vld [vmem:[%s5 + $0x1e0] sm:$0xff]
    %v221 = vld [vmem:[%s5 + $0x1e8] sm:$0xff]
    %v222 = vld [vmem:[%s5 + $0x1f0] sm:$0xff]
    %v223 = vld [vmem:[%s5 + $0x1f8] sm:$0xff]
    %v224 = vld [vmem:[%s5 + $0x200] sm:$0xff]
    %v225 = vld [vmem:[%s5 + $0x208] sm:$0xff]
    %v226 = vld [vmem:[%s5 + $0x210] sm:$0xff]
    %v227 = vld [vmem:[%s5 + $0x218] sm:$0xff]
    %v228 = vld [vmem:[%s5 + $0x220] sm:$0xff]
    %v229 = vld [vmem:[%s5 + $0x228] sm:$0xff]
    %v230 = vld [vmem:[%s5 + $0x230] sm:$0xff]
    %v231 = vld [vmem:[%s5 + $0x238] sm:$0xff]
    %v232 = vld [vmem:[%s5 + $0x240] sm:$0xff]
    %v233 = vld [vmem:[%s5 + $0x248] sm:$0xff]
    %v234 = vld [vmem:[%s5 + $0x250] sm:$0xff]
    %v235 = vld [vmem:[%s5 + $0x258] sm:$0xff]
    %v236 = vld [vmem:[%s5 + $0x260] sm:$0xff]
    %v237 = vld [vmem:[%s5 + $0x268] sm:$0xff]
    %v238 = vld [vmem:[%s5 + $0x270] sm:$0xff]
    %v239 = vld [vmem:[%s5 + $0x278] sm:$0xff]
    %v240 = vld [vmem:[%s5 + $0x280] sm:$0xff]
    %v241 = vld [vmem:[%s5 + $0x288] sm:$0xff]
    %v242 = vld [vmem:[%s5 + $0x290] sm:$0xff]
    %v243 = vld [vmem:[%s5 + $0x298] sm:$0xff]
    %v244 = vld [vmem:[%s5 + $0x2a0] sm:$0xff]
    %v245 = vld [vmem:[%s5 + $0x2a8] sm:$0xff]
    %v246 = vld [vmem:[%s5 + $0x2b0] sm:$0xff]
    %v247 = vld [vmem:[%s5 + $0x2b8] sm:$0xff]
    %v248 = vld [vmem:[%s5 + $0x2c0] sm:$0xff]
    %v249 = vld [vmem:[%s5 + $0x2c8] sm:$0xff]
    %v250 = vld [vmem:[%s5 + $0x2d0] sm:$0xff]
    %v251 = vld [vmem:[%s5 + $0x2d8] sm:$0xff]
    %v252 = vld [vmem:[%s5 + $0x2e0] sm:$0xff]
    %v253 = vld [vmem:[%s5 + $0x2e8] sm:$0xff]
    %v254 = vld [vmem:[%s5 + $0x2f0] sm:$0xff]
    %v255 = vld [vmem:[%s5 + $0x2f8] sm:$0xff]
    %v256 = vld [vmem:[%s6] sm:$0x7]
    %v258 = vperm.slane %v256, 0
    %v259 = vperm.slane %v256, 1
    %v260 = vperm.slane %v256, 2
    %264 = vmatpush.msra.mxu0 %v205
    %265 = vmatpush.msra.mxu0 %v202
    %266 = vmatpush.msra.mxu0 %v199
    %267 = vmatpush.msra.mxu0 %v196
    %268 = vmatpush.msra.mxu0 %v193
    %269 = vmatpush.msra.mxu0 %v190
    %270 = vmatpush.msra.mxu0 %v187
    %271 = vmatpush.msra.mxu0 %v184
    %272 = vmatpush.msra.mxu0 %v181
    %273 = vmatpush.msra.mxu0 %v178
    %274 = vmatpush.msra.mxu0 %v175
    %275 = vmatpush.msra.mxu0 %v172
    %276 = vmatpush.msra.mxu0 %v169
    %277 = vmatpush.msra.mxu0 %v166
    %278 = vmatpush.msra.mxu0 %v163
    %279 = vmatpush.msra.mxu0 %v160
    %280 = vmatmul.f32.gmra.mxu0 %v158
    %v281 = vpop.f32.mrf.mxu0
    %v282 = vadd.f32 %v258, %v281
    %283 = vdwg.mxu0
    %284 = vmatpush.msra.mxu0 %v253
    %285 = vmatpush.msra.mxu0 %v250
    %286 = vmatpush.msra.mxu0 %v247
    %287 = vmatpush.msra.mxu0 %v244
    %288 = vmatpush.msra.mxu0 %v241
    %289 = vmatpush.msra.mxu0 %v238
    %290 = vmatpush.msra.mxu0 %v235
    %291 = vmatpush.msra.mxu0 %v232
    %292 = vmatpush.msra.mxu0 %v229
    %293 = vmatpush.msra.mxu0 %v226
    %294 = vmatpush.msra.mxu0 %v223
    %295 = vmatpush.msra.mxu0 %v220
    %296 = vmatpush.msra.mxu0 %v217
    %297 = vmatpush.msra.mxu0 %v214
    %298 = vmatpush.msra.mxu0 %v211
    %299 = vmatpush.msra.mxu0 %v208
    %300 = vmatmul.f32.gmra.mxu0 %v159
    %v301 = vpop.f32.mrf.mxu0
    %v302 = vadd.f32 %v282, %v301
    %303 = vdwg.mxu0
    %304 = vmatpush.msra.mxu0 %v206
    %305 = vmatpush.msra.mxu0 %v203
    %306 = vmatpush.msra.mxu0 %v200
    %307 = vmatpush.msra.mxu0 %v197
    %308 = vmatpush.msra.mxu0 %v194
    %309 = vmatpush.msra.mxu0 %v191
    %310 = vmatpush.msra.mxu0 %v188
    %311 = vmatpush.msra.mxu0 %v185
    %312 = vmatpush.msra.mxu0 %v182
    %313 = vmatpush.msra.mxu0 %v179
    %314 = vmatpush.msra.mxu0 %v176
    %315 = vmatpush.msra.mxu0 %v173
    %316 = vmatpush.msra.mxu0 %v170
    %317 = vmatpush.msra.mxu0 %v167
    %318 = vmatpush.msra.mxu0 %v164
    %319 = vmatpush.msra.mxu0 %v161
    %320 = vmatmul.f32.gmra.mxu0 %v158
    %v321 = vpop.f32.mrf.mxu0
    %v322 = vadd.f32 %v259, %v321
    %323 = vdwg.mxu0
    %324 = vmatpush.msra.mxu0 %v254
    %325 = vmatpush.msra.mxu0 %v251
    %326 = vmatpush.msra.mxu0 %v248
    %327 = vmatpush.msra.mxu0 %v245
    %328 = vmatpush.msra.mxu0 %v242
    %329 = vmatpush.msra.mxu0 %v239
    %330 = vmatpush.msra.mxu0 %v236
    %331 = vmatpush.msra.mxu0 %v233
    %332 = vmatpush.msra.mxu0 %v230
    %333 = vmatpush.msra.mxu0 %v227
    %334 = vmatpush.msra.mxu0 %v224
    %335 = vmatpush.msra.mxu0 %v221
    %336 = vmatpush.msra.mxu0 %v218
    %337 = vmatpush.msra.mxu0 %v215
    %338 = vmatpush.msra.mxu0 %v212
    %339 = vmatpush.msra.mxu0 %v209
    %340 = vmatmul.f32.gmra.mxu0 %v159
    %v341 = vpop.f32.mrf.mxu0
    %v342 = vadd.f32 %v322, %v341
    %343 = vdwg.mxu0
    %344 = vmatpush.msra.mxu0 %v207
    %345 = vmatpush.msra.mxu0 %v204
    %346 = vmatpush.msra.mxu0 %v201
    %347 = vmatpush.msra.mxu0 %v198
    %348 = vmatpush.msra.mxu0 %v195
    %349 = vmatpush.msra.mxu0 %v192
    %350 = vmatpush.msra.mxu0 %v189
    %351 = vmatpush.msra.mxu0 %v186
    %352 = vmatpush.msra.mxu0 %v183
    %353 = vmatpush.msra.mxu0 %v180
    %354 = vmatpush.msra.mxu0 %v177
    %355 = vmatpush.msra.mxu0 %v174
    %356 = vmatpush.msra.mxu0 %v171
    %357 = vmatpush.msra.mxu0 %v168
    %358 = vmatpush.msra.mxu0 %v165
    %359 = vmatpush.msra.mxu0 %v162
    %360 = vmatmul.f32.gmra.mxu0 %v158
    %v361 = vpop.f32.mrf.mxu0
    %v362 = vadd.f32 %v260, %v361
    %363 = vdwg.mxu0
    %364 = vmatpush.msra.mxu0 %v255
    %365 = vmatpush.msra.mxu0 %v252
    %366 = vmatpush.msra.mxu0 %v249
    %367 = vmatpush.msra.mxu0 %v246
    %368 = vmatpush.msra.mxu0 %v243
    %369 = vmatpush.msra.mxu0 %v240
    %370 = vmatpush.msra.mxu0 %v237
    %371 = vmatpush.msra.mxu0 %v234
    %372 = vmatpush.msra.mxu0 %v231
    %373 = vmatpush.msra.mxu0 %v228
    %374 = vmatpush.msra.mxu0 %v225
    %375 = vmatpush.msra.mxu0 %v222
    %376 = vmatpush.msra.mxu0 %v219
    %377 = vmatpush.msra.mxu0 %v216
    %378 = vmatpush.msra.mxu0 %v213
    %379 = vmatpush.msra.mxu0 %v210
    %380 = vmatmul.f32.gmra.mxu0 %v159
    %v381 = vpop.f32.mrf.mxu0
    %v382 = vadd.f32 %v362, %v381
    %383 = vdwg.mxu0
    %v384 = vld [vmem:[%s7] sm:$0xff]
    %v385 = vld [vmem:[%s7 + $0x8] sm:$0xff]
    %v386 = vld [vmem:[%s7 + $0x10] sm:$0xff]
    %v387 = vld [vmem:[%s7 + $0x18] sm:$0xff]
    %v388 = vld [vmem:[%s7 + $0x20] sm:$0xff]
    %v389 = vld [vmem:[%s7 + $0x28] sm:$0xff]
    %v390 = vld [vmem:[%s7 + $0x30] sm:$0xff]
    %v391 = vld [vmem:[%s7 + $0x38] sm:$0xff]
    %v392 = vld [vmem:[%s7 + $0x40] sm:$0xff]
    %v393 = vld [vmem:[%s7 + $0x48] sm:$0xff]
    %v394 = vld [vmem:[%s7 + $0x50] sm:$0xff]
    %v395 = vld [vmem:[%s7 + $0x58] sm:$0xff]
    %v396 = vld [vmem:[%s7 + $0x60] sm:$0xff]
    %v397 = vld [vmem:[%s7 + $0x68] sm:$0xff]
    %v398 = vld [vmem:[%s7 + $0x70] sm:$0xff]
    %v399 = vld [vmem:[%s7 + $0x78] sm:$0xff]
    %v400 = vld [vmem:[%s7 + $0x80] sm:$0xff]
    %v401 = vld [vmem:[%s7 + $0x88] sm:$0xff]
    %v402 = vld [vmem:[%s7 + $0x90] sm:$0xff]
    %v403 = vld [vmem:[%s7 + $0x98] sm:$0xff]
    %v404 = vld [vmem:[%s7 + $0xa0] sm:$0xff]
    %v405 = vld [vmem:[%s7 + $0xa8] sm:$0xff]
    %v406 = vld [vmem:[%s7 + $0xb0] sm:$0xff]
    %v407 = vld [vmem:[%s7 + $0xb8] sm:$0xff]
    %v408 = vld [vmem:[%s7 + $0xc0] sm:$0xff]
    %v409 = vld [vmem:[%s7 + $0xc8] sm:$0xff]
    %v410 = vld [vmem:[%s7 + $0xd0] sm:$0xff]
    %v411 = vld [vmem:[%s7 + $0xd8] sm:$0xff]
    %v412 = vld [vmem:[%s7 + $0xe0] sm:$0xff]
    %v413 = vld [vmem:[%s7 + $0xe8] sm:$0xff]
    %v414 = vld [vmem:[%s7 + $0xf0] sm:$0xff]
    %v415 = vld [vmem:[%s7 + $0xf8] sm:$0xff]
    %v416 = vld [vmem:[%s7 + $0x100] sm:$0xff]
    %v417 = vld [vmem:[%s7 + $0x108] sm:$0xff]
    %v418 = vld [vmem:[%s7 + $0x110] sm:$0xff]
    %v419 = vld [vmem:[%s7 + $0x118] sm:$0xff]
    %v420 = vld [vmem:[%s7 + $0x120] sm:$0xff]
    %v421 = vld [vmem:[%s7 + $0x128] sm:$0xff]
    %v422 = vld [vmem:[%s7 + $0x130] sm:$0xff]
    %v423 = vld [vmem:[%s7 + $0x138] sm:$0xff]
    %v424 = vld [vmem:[%s7 + $0x140] sm:$0xff]
    %v425 = vld [vmem:[%s7 + $0x148] sm:$0xff]
    %v426 = vld [vmem:[%s7 + $0x150] sm:$0xff]
    %v427 = vld [vmem:[%s7 + $0x158] sm:$0xff]
    %v428 = vld [vmem:[%s7 + $0x160] sm:$0xff]
    %v429 = vld [vmem:[%s7 + $0x168] sm:$0xff]
    %v430 = vld [vmem:[%s7 + $0x170] sm:$0xff]
    %v431 = vld [vmem:[%s7 + $0x178] sm:$0xff]
    %v432 = vld [vmem:[%s7 + $0x180] sm:$0xff]
    %v433 = vld [vmem:[%s7 + $0x188] sm:$0xff]
    %v434 = vld [vmem:[%s7 + $0x190] sm:$0xff]
    %v435 = vld [vmem:[%s7 + $0x198] sm:$0xff]
    %v436 = vld [vmem:[%s7 + $0x1a0] sm:$0xff]
    %v437 = vld [vmem:[%s7 + $0x1a8] sm:$0xff]
    %v438 = vld [vmem:[%s7 + $0x1b0] sm:$0xff]
    %v439 = vld [vmem:[%s7 + $0x1b8] sm:$0xff]
    %v440 = vld [vmem:[%s7 + $0x1c0] sm:$0xff]
    %v441 = vld [vmem:[%s7 + $0x1c8] sm:$0xff]
    %v442 = vld [vmem:[%s7 + $0x1d0] sm:$0xff]
    %v443 = vld [vmem:[%s7 + $0x1d8] sm:$0xff]
    %v444 = vld [vmem:[%s7 + $0x1e0] sm:$0xff]
    %v445 = vld [vmem:[%s7 + $0x1e8] sm:$0xff]
    %v446 = vld [vmem:[%s7 + $0x1f0] sm:$0xff]
    %v447 = vld [vmem:[%s7 + $0x1f8] sm:$0xff]
    %v448 = vld [vmem:[%s7 + $0x200] sm:$0xff]
    %v449 = vld [vmem:[%s7 + $0x208] sm:$0xff]
    %v450 = vld [vmem:[%s7 + $0x210] sm:$0xff]
    %v451 = vld [vmem:[%s7 + $0x218] sm:$0xff]
    %v452 = vld [vmem:[%s7 + $0x220] sm:$0xff]
    %v453 = vld [vmem:[%s7 + $0x228] sm:$0xff]
    %v454 = vld [vmem:[%s7 + $0x230] sm:$0xff]
    %v455 = vld [vmem:[%s7 + $0x238] sm:$0xff]
    %v456 = vld [vmem:[%s7 + $0x240] sm:$0xff]
    %v457 = vld [vmem:[%s7 + $0x248] sm:$0xff]
    %v458 = vld [vmem:[%s7 + $0x250] sm:$0xff]
    %v459 = vld [vmem:[%s7 + $0x258] sm:$0xff]
    %v460 = vld [vmem:[%s7 + $0x260] sm:$0xff]
    %v461 = vld [vmem:[%s7 + $0x268] sm:$0xff]
    %v462 = vld [vmem:[%s7 + $0x270] sm:$0xff]
    %v463 = vld [vmem:[%s7 + $0x278] sm:$0xff]
    %v464 = vld [vmem:[%s7 + $0x280] sm:$0xff]
    %v465 = vld [vmem:[%s7 + $0x288] sm:$0xff]
    %v466 = vld [vmem:[%s7 + $0x290] sm:$0xff]
    %v467 = vld [vmem:[%s7 + $0x298] sm:$0xff]
    %v468 = vld [vmem:[%s7 + $0x2a0] sm:$0xff]
    %v469 = vld [vmem:[%s7 + $0x2a8] sm:$0xff]
    %v470 = vld [vmem:[%s7 + $0x2b0] sm:$0xff]
    %v471 = vld [vmem:[%s7 + $0x2b8] sm:$0xff]
    %v472 = vld [vmem:[%s7 + $0x2c0] sm:$0xff]
    %v473 = vld [vmem:[%s7 + $0x2c8] sm:$0xff]
    %v474 = vld [vmem:[%s7 + $0x2d0] sm:$0xff]
    %v475 = vld [vmem:[%s7 + $0x2d8] sm:$0xff]
    %v476 = vld [vmem:[%s7 + $0x2e0] sm:$0xff]
    %v477 = vld [vmem:[%s7 + $0x2e8] sm:$0xff]
    %v478 = vld [vmem:[%s7 + $0x2f0] sm:$0xff]
    %v479 = vld [vmem:[%s7 + $0x2f8] sm:$0xff]
    %v480 = vld [vmem:[%s8] sm:$0x3]
    %v482 = vperm.slane %v480, 0
    %v483 = vperm.slane %v480, 1
    %486 = vmatpush.msra.mxu0 %v414
    %487 = vmatpush.msra.mxu0 %v412
    %488 = vmatpush.msra.mxu0 %v410
    %489 = vmatpush.msra.mxu0 %v408
    %490 = vmatpush.msra.mxu0 %v406
    %491 = vmatpush.msra.mxu0 %v404
    %492 = vmatpush.msra.mxu0 %v402
    %493 = vmatpush.msra.mxu0 %v400
    %494 = vmatpush.msra.mxu0 %v398
    %495 = vmatpush.msra.mxu0 %v396
    %496 = vmatpush.msra.mxu0 %v394
    %497 = vmatpush.msra.mxu0 %v392
    %498 = vmatpush.msra.mxu0 %v390
    %499 = vmatpush.msra.mxu0 %v388
    %500 = vmatpush.msra.mxu0 %v386
    %501 = vmatpush.msra.mxu0 %v384
    %502 = vmatmul.f32.gmra.mxu0 %v302
    %v503 = vpop.f32.mrf.mxu0
    %v504 = vadd.f32 %v482, %v503
    %505 = vdwg.mxu0
    %506 = vmatpush.msra.mxu0 %v446
    %507 = vmatpush.msra.mxu0 %v444
    %508 = vmatpush.msra.mxu0 %v442
    %509 = vmatpush.msra.mxu0 %v440
    %510 = vmatpush.msra.mxu0 %v438
    %511 = vmatpush.msra.mxu0 %v436
    %512 = vmatpush.msra.mxu0 %v434
    %513 = vmatpush.msra.mxu0 %v432
    %514 = vmatpush.msra.mxu0 %v430
    %515 = vmatpush.msra.mxu0 %v428
    %516 = vmatpush.msra.mxu0 %v426
    %517 = vmatpush.msra.mxu0 %v424
    %518 = vmatpush.msra.mxu0 %v422
    %519 = vmatpush.msra.mxu0 %v420
    %520 = vmatpush.msra.mxu0 %v418
    %521 = vmatpush.msra.mxu0 %v416
    %522 = vmatmul.f32.gmra.mxu0 %v342
    %v523 = vpop.f32.mrf.mxu0
    %v524 = vadd.f32 %v504, %v523
    %525 = vdwg.mxu0
    %526 = vmatpush.msra.mxu0 %v478
    %527 = vmatpush.msra.mxu0 %v476
    %528 = vmatpush.msra.mxu0 %v474
    %529 = vmatpush.msra.mxu0 %v472
    %530 = vmatpush.msra.mxu0 %v470
    %531 = vmatpush.msra.mxu0 %v468
    %532 = vmatpush.msra.mxu0 %v466
    %533 = vmatpush.msra.mxu0 %v464
    %534 = vmatpush.msra.mxu0 %v462
    %535 = vmatpush.msra.mxu0 %v460
    %536 = vmatpush.msra.mxu0 %v458
    %537 = vmatpush.msra.mxu0 %v456
    %538 = vmatpush.msra.mxu0 %v454
    %539 = vmatpush.msra.mxu0 %v452
    %540 = vmatpush.msra.mxu0 %v450
    %541 = vmatpush.msra.mxu0 %v448
    %542 = vmatmul.f32.gmra.mxu0 %v382
    %v543 = vpop.f32.mrf.mxu0
    %v544 = vadd.f32 %v524, %v543
    %545 = vdwg.mxu0
    %546 = vmatpush.msra.mxu0 %v415
    %547 = vmatpush.msra.mxu0 %v413
    %548 = vmatpush.msra.mxu0 %v411
    %549 = vmatpush.msra.mxu0 %v409
    %550 = vmatpush.msra.mxu0 %v407
    %551 = vmatpush.msra.mxu0 %v405
    %552 = vmatpush.msra.mxu0 %v403
    %553 = vmatpush.msra.mxu0 %v401
    %554 = vmatpush.msra.mxu0 %v399
    %555 = vmatpush.msra.mxu0 %v397
    %556 = vmatpush.msra.mxu0 %v395
    %557 = vmatpush.msra.mxu0 %v393
    %558 = vmatpush.msra.mxu0 %v391
    %559 = vmatpush.msra.mxu0 %v389
    %560 = vmatpush.msra.mxu0 %v387
    %561 = vmatpush.msra.mxu0 %v385
    %562 = vmatmul.f32.gmra.mxu0 %v302
    %v563 = vpop.f32.mrf.mxu0
    %v564 = vadd.f32 %v483, %v563
    %565 = vdwg.mxu0
    %566 = vmatpush.msra.mxu0 %v447
    %567 = vmatpush.msra.mxu0 %v445
    %568 = vmatpush.msra.mxu0 %v443
    %569 = vmatpush.msra.mxu0 %v441
    %570 = vmatpush.msra.mxu0 %v439
    %571 = vmatpush.msra.mxu0 %v437
    %572 = vmatpush.msra.mxu0 %v435
    %573 = vmatpush.msra.mxu0 %v433
    %574 = vmatpush.msra.mxu0 %v431
    %575 = vmatpush.msra.mxu0 %v429
    %576 = vmatpush.msra.mxu0 %v427
    %577 = vmatpush.msra.mxu0 %v425
    %578 = vmatpush.msra.mxu0 %v423
    %579 = vmatpush.msra.mxu0 %v421
    %580 = vmatpush.msra.mxu0 %v419
    %581 = vmatpush.msra.mxu0 %v417
    %582 = vmatmul.f32.gmra.mxu0 %v342
    %v583 = vpop.f32.mrf.mxu0
    %v584 = vadd.f32 %v564, %v583
    %585 = vdwg.mxu0
    %586 = vmatpush.msra.mxu0 %v479
    %587 = vmatpush.msra.mxu0 %v477
    %588 = vmatpush.msra.mxu0 %v475
    %589 = vmatpush.msra.mxu0 %v473
    %590 = vmatpush.msra.mxu0 %v471
    %591 = vmatpush.msra.mxu0 %v469
    %592 = vmatpush.msra.mxu0 %v467
    %593 = vmatpush.msra.mxu0 %v465
    %594 = vmatpush.msra.mxu0 %v463
    %595 = vmatpush.msra.mxu0 %v461
    %596 = vmatpush.msra.mxu0 %v459
    %597 = vmatpush.msra.mxu0 %v457
    %598 = vmatpush.msra.mxu0 %v455
    %599 = vmatpush.msra.mxu0 %v453
    %600 = vmatpush.msra.mxu0 %v451
    %601 = vmatpush.msra.mxu0 %v449
    %602 = vmatmul.f32.gmra.mxu0 %v382
    %v603 = vpop.f32.mrf.mxu0
    %v604 = vadd.f32 %v584, %v603
    %605 = vdwg.mxu0
    %v606 = vmul.f32 %v544, 0.1
    %v607 = vmul.f32 %v604, 0.1
    %v608 = vmax.f32 %v544, %v606
    %v609 = vmax.f32 %v604, %v607
    %v610 = vld [vmem:[%s9] sm:$0xff]
    %v611 = vld [vmem:[%s9 + $0x8] sm:$0xff]
    %v612 = vld [vmem:[%s9 + $0x10] sm:$0xff]
    %v613 = vld [vmem:[%s9 + $0x18] sm:$0xff]
    %v614 = vld [vmem:[%s9 + $0x20] sm:$0xff]
    %v615 = vld [vmem:[%s9 + $0x28] sm:$0xff]
    %v616 = vld [vmem:[%s9 + $0x30] sm:$0xff]
    %v617 = vld [vmem:[%s9 + $0x38] sm:$0xff]
    %v618 = vld [vmem:[%s9 + $0x40] sm:$0xff]
    %v619 = vld [vmem:[%s9 + $0x48] sm:$0xff]
    %v620 = vld [vmem:[%s9 + $0x50] sm:$0xff]
    %v621 = vld [vmem:[%s9 + $0x58] sm:$0xff]
    %v622 = vld [vmem:[%s9 + $0x60] sm:$0xff]
    %v623 = vld [vmem:[%s9 + $0x68] sm:$0xff]
    %v624 = vld [vmem:[%s9 + $0x70] sm:$0xff]
    %v625 = vld [vmem:[%s9 + $0x78] sm:$0xff]
    %v626 = vld [vmem:[%s9 + $0x80] sm:$0xff]
    %v627 = vld [vmem:[%s9 + $0x88] sm:$0xff]
    %v628 = vld [vmem:[%s9 + $0x90] sm:$0xff]
    %v629 = vld [vmem:[%s9 + $0x98] sm:$0xff]
    %v630 = vld [vmem:[%s9 + $0xa0] sm:$0xff]
    %v631 = vld [vmem:[%s9 + $0xa8] sm:$0xff]
    %v632 = vld [vmem:[%s9 + $0xb0] sm:$0xff]
    %v633 = vld [vmem:[%s9 + $0xb8] sm:$0xff]
    %v634 = vld [vmem:[%s9 + $0xc0] sm:$0xff]
    %v635 = vld [vmem:[%s9 + $0xc8] sm:$0xff]
    %v636 = vld [vmem:[%s9 + $0xd0] sm:$0xff]
    %v637 = vld [vmem:[%s9 + $0xd8] sm:$0xff]
    %v638 = vld [vmem:[%s9 + $0xe0] sm:$0xff]
    %v639 = vld [vmem:[%s9 + $0xe8] sm:$0xff]
    %v640 = vld [vmem:[%s9 + $0xf0] sm:$0xff]
    %v641 = vld [vmem:[%s9 + $0xf8] sm:$0xff]
    %v642 = vld [vmem:[%s10] sm:$0x1]
    %v644 = vperm.slane %v642, 0
    %646 = vmatpush.msra.mxu0 %v625
    %647 = vmatpush.msra.mxu0 %v624
    %648 = vmatpush.msra.mxu0 %v623
    %649 = vmatpush.msra.mxu0 %v622
    %650 = vmatpush.msra.mxu0 %v621
    %651 = vmatpush.msra.mxu0 %v620
    %652 = vmatpush.msra.mxu0 %v619
    %653 = vmatpush.msra.mxu0 %v618
    %654 = vmatpush.msra.mxu0 %v617
    %655 = vmatpush.msra.mxu0 %v616
    %656 = vmatpush.msra.mxu0 %v615
    %657 = vmatpush.msra.mxu0 %v614
    %658 = vmatpush.msra.mxu0 %v613
    %659 = vmatpush.msra.mxu0 %v612
    %660 = vmatpush.msra.mxu0 %v611
    %661 = vmatpush.msra.mxu0 %v610
    %662 = vmatmul.f32.gmra.mxu0 %v608
    %v663 = vpop.f32.mrf.mxu0
    %v664 = vadd.f32 %v644, %v663
    %665 = vdwg.mxu0
    %666 = vmatpush.msra.mxu0 %v641
    %667 = vmatpush.msra.mxu0 %v640
    %668 = vmatpush.msra.mxu0 %v639
    %669 = vmatpush.msra.mxu0 %v638
    %670 = vmatpush.msra.mxu0 %v637
    %671 = vmatpush.msra.mxu0 %v636
    %672 = vmatpush.msra.mxu0 %v635
    %673 = vmatpush.msra.mxu0 %v634
    %674 = vmatpush.msra.mxu0 %v633
    %675 = vmatpush.msra.mxu0 %v632
    %676 = vmatpush.msra.mxu0 %v631
    %677 = vmatpush.msra.mxu0 %v630
    %678 = vmatpush.msra.mxu0 %v629
    %679 = vmatpush.msra.mxu0 %v628
    %680 = vmatpush.msra.mxu0 %v627
    %681 = vmatpush.msra.mxu0 %v626
    %682 = vmatmul.f32.gmra.mxu0 %v609
    %v683 = vpop.f32.mrf.mxu0
    %v684 = vadd.f32 %v664, %v683
    %685 = vdwg.mxu0
    %686 = vst [vmem:[#allocation2] sm:$0xff] %v684
    %v687 = vand.u32 2147483647, %v302
    %v688 = vand.u32 2147483647, %v342
    %v689 = vand.u32 2147483647, %v382
    %v690 = vrot.slane %v687, 4
    %v691 = vadd.f32 %v687, %v690
    %v692 = vrot.slane %v691, 2
    %v693 = vadd.f32 %v691, %v692
    %v694 = vrot.slane %v693, 1
    %v695 = vadd.f32 %v693, %v694
    %v696 = vrot.slane %v688, 4
    %v697 = vadd.f32 %v688, %v696
    %v698 = vrot.slane %v697, 2
    %v699 = vadd.f32 %v697, %v698
    %v700 = vrot.slane %v699, 1
    %v701 = vadd.f32 %v699, %v700
    %v702 = vrot.slane %v689, 4
    %v703 = vadd.f32 %v689, %v702
    %v704 = vrot.slane %v703, 2
    %v705 = vadd.f32 %v703, %v704
    %v706 = vrot.slane %v705, 1
    %v707 = vadd.f32 %v705, %v706
    %v711 = vrot.slane %v701, 7
    %v712 = vrot.slane %v707, 6
    %vm713 = vcmask 1040384
    %v714 = vsel %vm713, %v695, %v711
    %vm715 = vcmask 1041408
    %v716 = vsel %vm715, %v714, %v712
    %v718 = vlaneseq
    %vm719 = vcmp.ge.s32.totalorder %v718, 0
    %vm720 = vcmp.lt.s32.totalorder %v718, 384
    %vm721 = vmand %vm719, %vm720
    %722 = vst.msk [vmem:[%s12] sm:$0x7] %vm721, %v716
    // Predicated region
    $region46: #{robust_sparse_autoencoder_forward.1} parent=1 // pred_check
      _
    $region47: #{robust_sparse_autoencoder_forward.1} parent=1 // pred_check_branch
      %724 = sbr.rel (0) target = $region49
    $region48: #{robust_sparse_autoencoder_forward.1} parent=1 // pred_region
      %726 = vsyncadd [#allocation3], 0
      %s728 = sshll.u32 [#allocation2], 4
      %s729 = int_to_ptr.vmem [resolvable:$true] %s728
      %s730 = sshll.u32 %s11, 4
      %s731 = int_to_ptr.hbm [resolvable:$true] %s730
      %733 = dma.vmem_to_hbm [thread:$0]  %s729, 128, %s731, [#allocation3]
    $region49: #{robust_sparse_autoencoder_forward.1} parent=1 // pred_fallthru
      _
    // Predicated region
    $region50: #{robust_sparse_autoencoder_forward.1} parent=1 // pred_check
      _
    $region51: #{robust_sparse_autoencoder_forward.1} parent=1 // pred_check_branch
      %735 = sbr.rel (0) target = $region53
    $region52: #{robust_sparse_autoencoder_forward.1} parent=1 // pred_region
      _
    $region53: #{robust_sparse_autoencoder_forward.1} parent=1 // pred_fallthru
      _
    // Predicated region
    $region54: #{robust_sparse_autoencoder_forward.1} parent=1 // pred_check
      _
    $region55: #{robust_sparse_autoencoder_forward.1} parent=1 // pred_check_branch
      %737 = sbr.rel (0) target = $region57
    $region56: #{robust_sparse_autoencoder_forward.1} parent=1 // pred_region
      %739 = dma.done [#allocation3], 128
    $region57: #{robust_sparse_autoencoder_forward.1} parent=1 // pred_fallthru
      _
    // Predicated region
    $region58: #{robust_sparse_autoencoder_forward.1} parent=1 // pred_check
      _
    $region59: #{robust_sparse_autoencoder_forward.1} parent=1 // pred_check_branch
      %741 = sbr.rel (0) target = $region61
    $region60: #{robust_sparse_autoencoder_forward.1} parent=1 // pred_region
      _
    $region61: #{robust_sparse_autoencoder_forward.1} parent=1 // pred_fallthru
      _
    %742 = vsyncpa [#allocation3], 1

</llo_original>
